<compile_context>
chip_gen: v6e
topology: v6e:2x2x1
jax: 0.10.0
libtpu: 0.0.40
codegen_flags: <defaults>
</compile_context>

<pallas_src>
import jax
import jax.numpy as jnp
from jax.experimental import pallas as pl
from jax.experimental.pallas import tpu as pltpu


_NPAR = 2                                # partial-sum slices (v7x megacore split)
_SUB = 8                                 # sublane granularity
_TARGET_TILE_BYTES = 2 * 1024 * 1024     # per streamed input buffer
_VMEM_LIMIT = 40 * 1024 * 1024           # explicit scoped-VMEM limit (fits all gens)


def _round_up(x, m):
    return ((x + m - 1) // m) * m


# ----------------------------------------------------------------------------
# Second-order MSE kernel: sum |i - t|^2 over everything.
# ----------------------------------------------------------------------------
def _make_scd_kernel(has_input):
    def kernel(*refs):
        if has_input:
            i_ref, t_ref, out_ref = refs
        else:
            t_ref, out_ref = refs
        step = pl.program_id(1)

        @pl.when(step == 0)
        def _():
            out_ref[...] = jnp.zeros_like(out_ref)

        t = t_ref[...].astype(jnp.float32)                  # (g, 8, L)
        if has_input:
            gap = i_ref[...].astype(jnp.float32) - t
        else:
            gap = t                                         # |0 - t|^2 == |t|^2
        # reduce over the leading (non-tiled) axis: pure (8, L) slab adds.
        out_ref[...] += jnp.sum(gap * gap, axis=0)
    return kernel


def scd_order_mse(inp, target):
    (t_scd,) = target
    has_input = inp is not None
    B, P, T, _ = t_scd.shape
    L = T * 2
    R = B * P

    arrays = []
    if has_input:
        (i_scd,) = inp
        arrays.append(i_scd)
    arrays.append(t_scd)

    # Row-tile planning: biggest tile under the per-buffer budget, multiple of 8.
    tr_budget = max(_SUB, (_TARGET_TILE_BYTES // (L * 4)) // _SUB * _SUB)
    tr_needed = _round_up(pl.cdiv(R, _NPAR), _SUB)
    tr = min(tr_budget, tr_needed)
    Rp = _round_up(R, tr * _NPAR)
    n_chunks = Rp // (tr * _NPAR)
    g = tr // _SUB                                          # 8-row groups per tile

    def prep(x):
        x = x.reshape(R, L)                                 # free, contiguous reshape
        if Rp != R:                                         # zero rows add 0 to the sum
            x = jnp.pad(x, ((0, Rp - R), (0, 0)))
        return x.reshape(Rp // _SUB, _SUB, L)               # free reshape
    arrays = [prep(a) for a in arrays]

    blk = pl.BlockSpec((g, _SUB, L), lambda c, s: (c * n_chunks + s, 0, 0))
    partials = pl.pallas_call(
        _make_scd_kernel(has_input),
        out_shape=jax.ShapeDtypeStruct((_NPAR, _SUB, L), jnp.float32),
        grid=(_NPAR, n_chunks),
        in_specs=[blk] * len(arrays),
        out_specs=pl.BlockSpec((None, _SUB, L), lambda c, s: (c, 0, 0)),
        compiler_params=pltpu.CompilerParams(
            dimension_semantics=("parallel", "arbitrary"),
            vmem_limit_bytes=_VMEM_LIMIT),
    )(*arrays)
    # mse_norm: mean over sq_err.view(-1); sq_err has shape (B, P, T)
    return jnp.sum(partials) / jnp.float32(B * P * T)


# ----------------------------------------------------------------------------
# First-order MSE kernel: gap = s_gap - f_gap[xi0]*t_f[xi1] - f_gap[xi1]*t_f[xi0]
# ----------------------------------------------------------------------------
def _make_fst_kernel(tp, has_input):
    def kernel(xi_ref, *refs):
        if has_input:
            i_s_ref, t_s_ref, fgap_ref, tf_ref, out_ref = refs
        else:
            t_s_ref, fgap_ref, tf_ref, out_ref = refs

        c = pl.program_id(0)
        s = pl.program_id(1)
        n_chunks = pl.num_programs(1)

        @pl.when(s == 0)
        def _():
            out_ref[...] = jnp.zeros_like(out_ref)

        t_s = t_s_ref[...].astype(jnp.float32)              # (B, tp, L)
        if has_input:
            s_gap = i_s_ref[...].astype(jnp.float32) - t_s
        else:
            s_gap = -t_s                                    # i_s == 0

        base = (c * n_chunks + s) * tp                      # first pair of this tile
        acc = jnp.zeros(out_ref.shape, jnp.float32)         # (B, L)
        for q in range(tp):                                 # small static unroll
            xi0 = xi_ref[2 * base + 2 * q]
            xi1 = xi_ref[2 * base + 2 * q + 1]
            fg0 = fgap_ref[:, pl.ds(xi0, 1), :]             # (B, 1, L) VMEM gather
            fg1 = fgap_ref[:, pl.ds(xi1, 1), :]
            tf0 = tf_ref[:, pl.ds(xi0, 1), :]
            tf1 = tf_ref[:, pl.ds(xi1, 1), :]
            gq = s_gap[:, q:q + 1, :] - fg0 * tf1 - fg1 * tf0
            acc = acc + (gq * gq)[:, 0, :]
        out_ref[...] += acc
    return kernel


def fst_order_mse(inp, target, xi_idx):
    t_f, t_s = target
    has_input = inp is not None
    B, NF, T, _ = t_f.shape
    P = t_s.shape[1]
    L = T * 2
    TP = 8                                                  # xi pairs per grid step
    Pp = _round_up(P, TP * _NPAR)
    n_chunks = Pp // (TP * _NPAR)
    NFp = NF + 1                                            # + all-zero channel

    # Small first-order arrays: resident in VMEM for the whole grid.
    # TODO(synk): assumes 2*B*(NF+1)*T*2*4 bytes fits VMEM (true for typical
    # phaseexp1d sizes); would need streaming for very large B*NF*T.
    def prep_f(x):
        x = x.reshape(B, NF, L).astype(jnp.float32)
        return jnp.pad(x, ((0, 0), (0, 1), (0, 0)))         # zero channel at index NF
    t_f2 = prep_f(t_f)
    if has_input:
        i_f, i_s = inp
        fgap = prep_f(i_f) - t_f2
    else:
        fgap = -t_f2                                        # i_f == 0

    # Big second-order arrays: streamed; free reshape, pad the pair axis only.
    def prep_s(x):
        x = x.reshape(B, P, L)
        if Pp != P:
            x = jnp.pad(x, ((0, 0), (0, Pp - P), (0, 0)))
        return x
    s_arrays = []
    if has_input:
        s_arrays.append(prep_s(i_s))
    s_arrays.append(prep_s(t_s))

    # Flattened xi table (1-D int32 in SMEM via scalar prefetch); padded pairs
    # point at the all-zero channel NF so they contribute exactly 0.
    xi_flat = jnp.full((2 * Pp,), NF, dtype=jnp.int32)
    xi_flat = xi_flat.at[: 2 * P].set(xi_idx.astype(jnp.int32).reshape(-1))

    s_blk = pl.BlockSpec((B, TP, L), lambda c, s, xi: (0, c * n_chunks + s, 0))
    f_blk = pl.BlockSpec((B, NFp, L), lambda c, s, xi: (0, 0, 0))   # resident
    in_specs = [s_blk] * len(s_arrays) + [f_blk, f_blk]

    grid_spec = pltpu.PrefetchScalarGridSpec(
        num_scalar_prefetch=1,
        grid=(_NPAR, n_chunks),
        in_specs=in_specs,
        out_specs=pl.BlockSpec((None, B, L), lambda c, s, xi: (c, 0, 0)),
    )
    partials = pl.pallas_call(
        _make_fst_kernel(TP, has_input),
        out_shape=jax.ShapeDtypeStruct((_NPAR, B, L), jnp.float32),
        grid_spec=grid_spec,
        compiler_params=pltpu.CompilerParams(
            dimension_semantics=("parallel", "arbitrary"),
            vmem_limit_bytes=_VMEM_LIMIT),
    )(xi_flat, *s_arrays, fgap, t_f2)
    return jnp.sum(partials) / jnp.float32(B * P * T)


# ----------------------------------------------------------------------------
# Module-equivalent wrappers
# ----------------------------------------------------------------------------
class Phi:
    """Minimal stand-in for the scattering operator's metadata used by MSELoss."""

    def __init__(self, fst_order, xi_idx):
        self.fst_order = fst_order
        self.xi_idx = xi_idx  # (P, 2) int32 filter-index pairs


class MSELoss:
    def __init__(self, phi):
        self.phi = phi

    def __call__(self, inp, target):
        if self.phi.fst_order:
            return fst_order_mse(inp, target, self.phi.xi_idx)
        return scd_order_mse(inp, target)


# ----------------------------------------------------------------------------
# Pure-JAX references (for verification)
# ----------------------------------------------------------------------------
def _ref_fst(i_f, i_s, t_f, t_s, xi_idx):
    s_gap = i_s - t_s
    f_gap = i_f - t_f
    err0 = f_gap[:, xi_idx[:, 0]] * t_f[:, xi_idx[:, 1]]
    err1 = f_gap[:, xi_idx[:, 1]] * t_f[:, xi_idx[:, 0]]
    gap = s_gap - err0 - err1
    sq = gap[..., 0] ** 2 + gap[..., 1] ** 2
    return jnp.mean(sq.reshape(-1))


def _ref_scd(i_scd, t_scd):
    gap = i_scd - t_scd
    sq = gap[..., 0] ** 2 + gap[..., 1] ** 2
    return jnp.mean(sq.reshape(-1))


# ----------------------------------------------------------------------------
if __name__ == "__main__":
    key = jax.random.PRNGKey(0)
    B, NF, T, P = 2, 6, 128, 5  # batch, 1st-order filters, time, xi pairs

    k1, k2, k3, k4 = jax.random.split(key, 4)
    i_f = jax.random.normal(k1, (B, NF, T, 2), dtype=jnp.float32)
    t_f = jax.random.normal(k2, (B, NF, T, 2), dtype=jnp.float32)
    i_s = jax.random.normal(k3, (B, P, T, 2), dtype=jnp.float32)
    t_s = jax.random.normal(k4, (B, P, T, 2), dtype=jnp.float32)

    # Deterministic filter-pair indices (phi.xi_idx).
    xi_idx = jnp.array([[0, 1], [1, 2], [2, 3], [3, 4], [4, 5]], dtype=jnp.int32)

    # --- first-order path (phi.fst_order == True) ---
    loss_fst = MSELoss(Phi(fst_order=True, xi_idx=xi_idx))
    out_fst = jax.block_until_ready(loss_fst((i_f, i_s), (t_f, t_s)))
    ref_fst = _ref_fst(i_f, i_s, t_f, t_s, xi_idx)
    assert jnp.allclose(out_fst, ref_fst, rtol=1e-5, atol=1e-5), (out_fst, ref_fst)

    # also exercise the input=None branch (no zero tensors materialized)
    out_fst_none = jax.block_until_ready(loss_fst(None, (t_f, t_s)))
    ref_fst_none = _ref_fst(jnp.zeros_like(t_f), jnp.zeros_like(t_s), t_f, t_s, xi_idx)
    assert jnp.allclose(out_fst_none, ref_fst_none, rtol=1e-5, atol=1e-5)

    # --- second-order path (phi.fst_order == False) ---
    loss_scd = MSELoss(Phi(fst_order=False, xi_idx=xi_idx))
    out_scd = jax.block_until_ready(loss_scd((i_s,), (t_s,)))
    ref_scd = _ref_scd(i_s, t_s)
    assert jnp.allclose(out_scd, ref_scd, rtol=1e-5, atol=1e-5), (out_scd, ref_scd)

    out_scd_none = jax.block_until_ready(loss_scd(None, (t_s,)))
    ref_scd_none = _ref_scd(jnp.zeros_like(t_s), t_s)
    assert jnp.allclose(out_scd_none, ref_scd_none, rtol=1e-5, atol=1e-5)

    print("KERNEL_OK")
</pallas_src>

<mosaic_0001>
module attributes {stable_mosaic.version = 11 : i64} {
  func.func @kernel(%arg0: i32, %arg1: i32, %arg2: memref<32xi32, #tpu.memory_space<smem>>, %arg3: memref<2x8x256xf32, #tpu.memory_space<vmem>>, %arg4: memref<2x8x256xf32, #tpu.memory_space<vmem>>, %arg5: memref<2x7x256xf32, #tpu.memory_space<vmem>>, %arg6: memref<2x7x256xf32, #tpu.memory_space<vmem>>, %arg7: memref<1x2x256xf32, #tpu.memory_space<vmem>>) attributes {dimension_semantics = [#tpu.dimension_semantics<parallel>, #tpu.dimension_semantics<arbitrary>], iteration_bounds = array<i64: 2, 1>, scalar_prefetch = 1 : i64, scratch_operands = 0 : i64, tpu.core_type = #tpu.core_type<tc>, window_params = [{transform_indices = @transform_0, window_bounds = array<i64: 2, 8, 256>}, {transform_indices = @transform_1, window_bounds = array<i64: 2, 8, 256>}, {pipeline_mode = #tpu.pipeline_mode<synchronous>, transform_indices = @transform_2, window_bounds = array<i64: 2, 7, 256>}, {pipeline_mode = #tpu.pipeline_mode<synchronous>, transform_indices = @transform_3, window_bounds = array<i64: 2, 7, 256>}, {transform_indices = @transform_4, window_bounds = array<i64: 1, 2, 256>}]} {
    %c0_i32 = arith.constant 0 : i32
    %0 = arith.cmpi eq, %arg1, %c0_i32 : i32
    %1 = arith.extui %0 : i1 to i32
    %c0_i32_0 = arith.constant 0 : i32
    %2 = arith.cmpi ne, %1, %c0_i32_0 : i32
    scf.if %2 {
      %cst_110 = arith.constant 0.000000e+00 : f32
      %216 = vector.broadcast %cst_110 : f32 to vector<2x256xf32>
      %c0_111 = arith.constant 0 : index
      %c0_112 = arith.constant 0 : index
      %c0_113 = arith.constant 0 : index
      %217 = vector.load %arg7[%c0_111, %c0_112, %c0_113] : memref<1x2x256xf32, #tpu.memory_space<vmem>>, vector<1x2x256xf32>
      %218 = vector.shape_cast %217 : vector<1x2x256xf32> to vector<2x256xf32>
      %219 = vector.shape_cast %216 : vector<2x256xf32> to vector<1x2x256xf32>
      tpu.vector_store %arg7[%c0_111, %c0_112, %c0_113], %219 {strides = array<i32>} : memref<1x2x256xf32, #tpu.memory_space<vmem>>, vector<1x2x256xf32>,
    } else {
    }
    %c0 = arith.constant 0 : index
    %c0_1 = arith.constant 0 : index
    %c0_2 = arith.constant 0 : index
    %3 = vector.load %arg4[%c0, %c0_1, %c0_2] : memref<2x8x256xf32, #tpu.memory_space<vmem>>, vector<2x8x256xf32>
    %c0_3 = arith.constant 0 : index
    %c0_4 = arith.constant 0 : index
    %c0_5 = arith.constant 0 : index
    %4 = vector.load %arg3[%c0_3, %c0_4, %c0_5] : memref<2x8x256xf32, #tpu.memory_space<vmem>>, vector<2x8x256xf32>
    %5 = arith.subf %4, %3 : vector<2x8x256xf32>
    %c1_i32 = arith.constant 1 : i32
    %6 = arith.muli %arg0, %c1_i32 : i32
    %7 = arith.addi %6, %arg1 : i32
    %c8_i32 = arith.constant 8 : i32
    %8 = arith.muli %7, %c8_i32 : i32
    %cst = arith.constant 0.000000e+00 : f32
    %9 = vector.broadcast %cst : f32 to vector<2x256xf32>
    %c2_i32 = arith.constant 2 : i32
    %10 = arith.muli %c2_i32, %8 : i32
    %c0_i32_6 = arith.constant 0 : i32
    %11 = arith.addi %10, %c0_i32_6 : i32
    %12 = arith.index_cast %11 : i32 to index
    %13 = memref.load %arg2[%12] : memref<32xi32, #tpu.memory_space<smem>>
    %c2_i32_7 = arith.constant 2 : i32
    %14 = arith.muli %c2_i32_7, %8 : i32
    %c0_i32_8 = arith.constant 0 : i32
    %15 = arith.addi %14, %c0_i32_8 : i32
    %c1_i32_9 = arith.constant 1 : i32
    %16 = arith.addi %15, %c1_i32_9 : i32
    %17 = arith.index_cast %16 : i32 to index
    %18 = memref.load %arg2[%17] : memref<32xi32, #tpu.memory_space<smem>>
    %c0_10 = arith.constant 0 : index
    %19 = arith.index_cast %13 : i32 to index
    %c0_11 = arith.constant 0 : index
    %20 = vector.load %arg5[%c0_10, %19, %c0_11] : memref<2x7x256xf32, #tpu.memory_space<vmem>>, vector<2x1x256xf32>
    %c0_12 = arith.constant 0 : index
    %21 = arith.index_cast %18 : i32 to index
    %c0_13 = arith.constant 0 : index
    %22 = vector.load %arg5[%c0_12, %21, %c0_13] : memref<2x7x256xf32, #tpu.memory_space<vmem>>, vector<2x1x256xf32>
    %c0_14 = arith.constant 0 : index
    %23 = arith.index_cast %13 : i32 to index
    %c0_15 = arith.constant 0 : index
    %24 = vector.load %arg6[%c0_14, %23, %c0_15] : memref<2x7x256xf32, #tpu.memory_space<vmem>>, vector<2x1x256xf32>
    %c0_16 = arith.constant 0 : index
    %25 = arith.index_cast %18 : i32 to index
    %c0_17 = arith.constant 0 : index
    %26 = vector.load %arg6[%c0_16, %25, %c0_17] : memref<2x7x256xf32, #tpu.memory_space<vmem>>, vector<2x1x256xf32>
    %27 = vector.extract_strided_slice %5 {offsets = [0, 0, 0], sizes = [2, 1, 256], strides = [1, 1, 1]} : vector<2x8x256xf32> to vector<2x1x256xf32>
    %28 = arith.mulf %20, %26 : vector<2x1x256xf32>
    %29 = arith.subf %27, %28 : vector<2x1x256xf32>
    %30 = arith.mulf %22, %24 : vector<2x1x256xf32>
    %31 = arith.subf %29, %30 : vector<2x1x256xf32>
    %32 = arith.mulf %31, %31 : vector<2x1x256xf32>
    %33 = vector.shape_cast %32 : vector<2x1x256xf32> to vector<2x256xf32>
    %34 = arith.addf %9, %33 : vector<2x256xf32>
    %c2_i32_18 = arith.constant 2 : i32
    %35 = arith.muli %c2_i32_18, %8 : i32
    %c2_i32_19 = arith.constant 2 : i32
    %36 = arith.addi %35, %c2_i32_19 : i32
    %37 = arith.index_cast %36 : i32 to index
    %38 = memref.load %arg2[%37] : memref<32xi32, #tpu.memory_space<smem>>
    %c2_i32_20 = arith.constant 2 : i32
    %39 = arith.muli %c2_i32_20, %8 : i32
    %c2_i32_21 = arith.constant 2 : i32
    %40 = arith.addi %39, %c2_i32_21 : i32
    %c1_i32_22 = arith.constant 1 : i32
    %41 = arith.addi %40, %c1_i32_22 : i32
    %42 = arith.index_cast %41 : i32 to index
    %43 = memref.load %arg2[%42] : memref<32xi32, #tpu.memory_space<smem>>
    %c0_23 = arith.constant 0 : index
    %44 = arith.index_cast %38 : i32 to index
    %c0_24 = arith.constant 0 : index
    %45 = vector.load %arg5[%c0_23, %44, %c0_24] : memref<2x7x256xf32, #tpu.memory_space<vmem>>, vector<2x1x256xf32>
    %c0_25 = arith.constant 0 : index
    %46 = arith.index_cast %43 : i32 to index
    %c0_26 = arith.constant 0 : index
    %47 = vector.load %arg5[%c0_25, %46, %c0_26] : memref<2x7x256xf32, #tpu.memory_space<vmem>>, vector<2x1x256xf32>
    %c0_27 = arith.constant 0 : index
    %48 = arith.index_cast %38 : i32 to index
    %c0_28 = arith.constant 0 : index
    %49 = vector.load %arg6[%c0_27, %48, %c0_28] : memref<2x7x256xf32, #tpu.memory_space<vmem>>, vector<2x1x256xf32>
    %c0_29 = arith.constant 0 : index
    %50 = arith.index_cast %43 : i32 to index
    %c0_30 = arith.constant 0 : index
    %51 = vector.load %arg6[%c0_29, %50, %c0_30] : memref<2x7x256xf32, #tpu.memory_space<vmem>>, vector<2x1x256xf32>
    %52 = vector.extract_strided_slice %5 {offsets = [0, 1, 0], sizes = [2, 1, 256], strides = [1, 1, 1]} : vector<2x8x256xf32> to vector<2x1x256xf32>
    %53 = arith.mulf %45, %51 : vector<2x1x256xf32>
    %54 = arith.subf %52, %53 : vector<2x1x256xf32>
    %55 = arith.mulf %47, %49 : vector<2x1x256xf32>
    %56 = arith.subf %54, %55 : vector<2x1x256xf32>
    %57 = arith.mulf %56, %56 : vector<2x1x256xf32>
    %58 = vector.shape_cast %57 : vector<2x1x256xf32> to vector<2x256xf32>
    %59 = arith.addf %34, %58 : vector<2x256xf32>
    %c2_i32_31 = arith.constant 2 : i32
    %60 = arith.muli %c2_i32_31, %8 : i32
    %c4_i32 = arith.constant 4 : i32
    %61 = arith.addi %60, %c4_i32 : i32
    %62 = arith.index_cast %61 : i32 to index
    %63 = memref.load %arg2[%62] : memref<32xi32, #tpu.memory_space<smem>>
    %c2_i32_32 = arith.constant 2 : i32
    %64 = arith.muli %c2_i32_32, %8 : i32
    %c4_i32_33 = arith.constant 4 : i32
    %65 = arith.addi %64, %c4_i32_33 : i32
    %c1_i32_34 = arith.constant 1 : i32
    %66 = arith.addi %65, %c1_i32_34 : i32
    %67 = arith.index_cast %66 : i32 to index
    %68 = memref.load %arg2[%67] : memref<32xi32, #tpu.memory_space<smem>>
    %c0_35 = arith.constant 0 : index
    %69 = arith.index_cast %63 : i32 to index
    %c0_36 = arith.constant 0 : index
    %70 = vector.load %arg5[%c0_35, %69, %c0_36] : memref<2x7x256xf32, #tpu.memory_space<vmem>>, vector<2x1x256xf32>
    %c0_37 = arith.constant 0 : index
    %71 = arith.index_cast %68 : i32 to index
    %c0_38 = arith.constant 0 : index
    %72 = vector.load %arg5[%c0_37, %71, %c0_38] : memref<2x7x256xf32, #tpu.memory_space<vmem>>, vector<2x1x256xf32>
    %c0_39 = arith.constant 0 : index
    %73 = arith.index_cast %63 : i32 to index
    %c0_40 = arith.constant 0 : index
    %74 = vector.load %arg6[%c0_39, %73, %c0_40] : memref<2x7x256xf32, #tpu.memory_space<vmem>>, vector<2x1x256xf32>
    %c0_41 = arith.constant 0 : index
    %75 = arith.index_cast %68 : i32 to index
    %c0_42 = arith.constant 0 : index
    %76 = vector.load %arg6[%c0_41, %75, %c0_42] : memref<2x7x256xf32, #tpu.memory_space<vmem>>, vector<2x1x256xf32>
    %77 = vector.extract_strided_slice %5 {offsets = [0, 2, 0], sizes = [2, 1, 256], strides = [1, 1, 1]} : vector<2x8x256xf32> to vector<2x1x256xf32>
    %78 = arith.mulf %70, %76 : vector<2x1x256xf32>
    %79 = arith.subf %77, %78 : vector<2x1x256xf32>
    %80 = arith.mulf %72, %74 : vector<2x1x256xf32>
    %81 = arith.subf %79, %80 : vector<2x1x256xf32>
    %82 = arith.mulf %81, %81 : vector<2x1x256xf32>
    %83 = vector.shape_cast %82 : vector<2x1x256xf32> to vector<2x256xf32>
    %84 = arith.addf %59, %83 : vector<2x256xf32>
    %c2_i32_43 = arith.constant 2 : i32
    %85 = arith.muli %c2_i32_43, %8 : i32
    %c6_i32 = arith.constant 6 : i32
    %86 = arith.addi %85, %c6_i32 : i32
    %87 = arith.index_cast %86 : i32 to index
    %88 = memref.load %arg2[%87] : memref<32xi32, #tpu.memory_space<smem>>
    %c2_i32_44 = arith.constant 2 : i32
    %89 = arith.muli %c2_i32_44, %8 : i32
    %c6_i32_45 = arith.constant 6 : i32
    %90 = arith.addi %89, %c6_i32_45 : i32
    %c1_i32_46 = arith.constant 1 : i32
    %91 = arith.addi %90, %c1_i32_46 : i32
    %92 = arith.index_cast %91 : i32 to index
    %93 = memref.load %arg2[%92] : memref<32xi32, #tpu.memory_space<smem>>
    %c0_47 = arith.constant 0 : index
    %94 = arith.index_cast %88 : i32 to index
    %c0_48 = arith.constant 0 : index
    %95 = vector.load %arg5[%c0_47, %94, %c0_48] : memref<2x7x256xf32, #tpu.memory_space<vmem>>, vector<2x1x256xf32>
    %c0_49 = arith.constant 0 : index
    %96 = arith.index_cast %93 : i32 to index
    %c0_50 = arith.constant 0 : index
    %97 = vector.load %arg5[%c0_49, %96, %c0_50] : memref<2x7x256xf32, #tpu.memory_space<vmem>>, vector<2x1x256xf32>
    %c0_51 = arith.constant 0 : index
    %98 = arith.index_cast %88 : i32 to index
    %c0_52 = arith.constant 0 : index
    %99 = vector.load %arg6[%c0_51, %98, %c0_52] : memref<2x7x256xf32, #tpu.memory_space<vmem>>, vector<2x1x256xf32>
    %c0_53 = arith.constant 0 : index
    %100 = arith.index_cast %93 : i32 to index
    %c0_54 = arith.constant 0 : index
    %101 = vector.load %arg6[%c0_53, %100, %c0_54] : memref<2x7x256xf32, #tpu.memory_space<vmem>>, vector<2x1x256xf32>
    %102 = vector.extract_strided_slice %5 {offsets = [0, 3, 0], sizes = [2, 1, 256], strides = [1, 1, 1]} : vector<2x8x256xf32> to vector<2x1x256xf32>
    %103 = arith.mulf %95, %101 : vector<2x1x256xf32>
    %104 = arith.subf %102, %103 : vector<2x1x256xf32>
    %105 = arith.mulf %97, %99 : vector<2x1x256xf32>
    %106 = arith.subf %104, %105 : vector<2x1x256xf32>
    %107 = arith.mulf %106, %106 : vector<2x1x256xf32>
    %108 = vector.shape_cast %107 : vector<2x1x256xf32> to vector<2x256xf32>
    %109 = arith.addf %84, %108 : vector<2x256xf32>
    %c2_i32_55 = arith.constant 2 : i32
    %110 = arith.muli %c2_i32_55, %8 : i32
    %c8_i32_56 = arith.constant 8 : i32
    %111 = arith.addi %110, %c8_i32_56 : i32
    %112 = arith.index_cast %111 : i32 to index
    %113 = memref.load %arg2[%112] : memref<32xi32, #tpu.memory_space<smem>>
    %c2_i32_57 = arith.constant 2 : i32
    %114 = arith.muli %c2_i32_57, %8 : i32
    %c8_i32_58 = arith.constant 8 : i32
    %115 = arith.addi %114, %c8_i32_58 : i32
    %c1_i32_59 = arith.constant 1 : i32
    %116 = arith.addi %115, %c1_i32_59 : i32
    %117 = arith.index_cast %116 : i32 to index
    %118 = memref.load %arg2[%117] : memref<32xi32, #tpu.memory_space<smem>>
    %c0_60 = arith.constant 0 : index
    %119 = arith.index_cast %113 : i32 to index
    %c0_61 = arith.constant 0 : index
    %120 = vector.load %arg5[%c0_60, %119, %c0_61] : memref<2x7x256xf32, #tpu.memory_space<vmem>>, vector<2x1x256xf32>
    %c0_62 = arith.constant 0 : index
    %121 = arith.index_cast %118 : i32 to index
    %c0_63 = arith.constant 0 : index
    %122 = vector.load %arg5[%c0_62, %121, %c0_63] : memref<2x7x256xf32, #tpu.memory_space<vmem>>, vector<2x1x256xf32>
    %c0_64 = arith.constant 0 : index
    %123 = arith.index_cast %113 : i32 to index
    %c0_65 = arith.constant 0 : index
    %124 = vector.load %arg6[%c0_64, %123, %c0_65] : memref<2x7x256xf32, #tpu.memory_space<vmem>>, vector<2x1x256xf32>
    %c0_66 = arith.constant 0 : index
    %125 = arith.index_cast %118 : i32 to index
    %c0_67 = arith.constant 0 : index
    %126 = vector.load %arg6[%c0_66, %125, %c0_67] : memref<2x7x256xf32, #tpu.memory_space<vmem>>, vector<2x1x256xf32>
    %127 = vector.extract_strided_slice %5 {offsets = [0, 4, 0], sizes = [2, 1, 256], strides = [1, 1, 1]} : vector<2x8x256xf32> to vector<2x1x256xf32>
    %128 = arith.mulf %120, %126 : vector<2x1x256xf32>
    %129 = arith.subf %127, %128 : vector<2x1x256xf32>
    %130 = arith.mulf %122, %124 : vector<2x1x256xf32>
    %131 = arith.subf %129, %130 : vector<2x1x256xf32>
    %132 = arith.mulf %131, %131 : vector<2x1x256xf32>
    %133 = vector.shape_cast %132 : vector<2x1x256xf32> to vector<2x256xf32>
    %134 = arith.addf %109, %133 : vector<2x256xf32>
    %c2_i32_68 = arith.constant 2 : i32
    %135 = arith.muli %c2_i32_68, %8 : i32
    %c10_i32 = arith.constant 10 : i32
    %136 = arith.addi %135, %c10_i32 : i32
    %137 = arith.index_cast %136 : i32 to index
    %138 = memref.load %arg2[%137] : memref<32xi32, #tpu.memory_space<smem>>
    %c2_i32_69 = arith.constant 2 : i32
    %139 = arith.muli %c2_i32_69, %8 : i32
    %c10_i32_70 = arith.constant 10 : i32
    %140 = arith.addi %139, %c10_i32_70 : i32
    %c1_i32_71 = arith.constant 1 : i32
    %141 = arith.addi %140, %c1_i32_71 : i32
    %142 = arith.index_cast %141 : i32 to index
    %143 = memref.load %arg2[%142] : memref<32xi32, #tpu.memory_space<smem>>
    %c0_72 = arith.constant 0 : index
    %144 = arith.index_cast %138 : i32 to index
    %c0_73 = arith.constant 0 : index
    %145 = vector.load %arg5[%c0_72, %144, %c0_73] : memref<2x7x256xf32, #tpu.memory_space<vmem>>, vector<2x1x256xf32>
    %c0_74 = arith.constant 0 : index
    %146 = arith.index_cast %143 : i32 to index
    %c0_75 = arith.constant 0 : index
    %147 = vector.load %arg5[%c0_74, %146, %c0_75] : memref<2x7x256xf32, #tpu.memory_space<vmem>>, vector<2x1x256xf32>
    %c0_76 = arith.constant 0 : index
    %148 = arith.index_cast %138 : i32 to index
    %c0_77 = arith.constant 0 : index
    %149 = vector.load %arg6[%c0_76, %148, %c0_77] : memref<2x7x256xf32, #tpu.memory_space<vmem>>, vector<2x1x256xf32>
    %c0_78 = arith.constant 0 : index
    %150 = arith.index_cast %143 : i32 to index
    %c0_79 = arith.constant 0 : index
    %151 = vector.load %arg6[%c0_78, %150, %c0_79] : memref<2x7x256xf32, #tpu.memory_space<vmem>>, vector<2x1x256xf32>
    %152 = vector.extract_strided_slice %5 {offsets = [0, 5, 0], sizes = [2, 1, 256], strides = [1, 1, 1]} : vector<2x8x256xf32> to vector<2x1x256xf32>
    %153 = arith.mulf %145, %151 : vector<2x1x256xf32>
    %154 = arith.subf %152, %153 : vector<2x1x256xf32>
    %155 = arith.mulf %147, %149 : vector<2x1x256xf32>
    %156 = arith.subf %154, %155 : vector<2x1x256xf32>
    %157 = arith.mulf %156, %156 : vector<2x1x256xf32>
    %158 = vector.shape_cast %157 : vector<2x1x256xf32> to vector<2x256xf32>
    %159 = arith.addf %134, %158 : vector<2x256xf32>
    %c2_i32_80 = arith.constant 2 : i32
    %160 = arith.muli %c2_i32_80, %8 : i32
    %c12_i32 = arith.constant 12 : i32
    %161 = arith.addi %160, %c12_i32 : i32
    %162 = arith.index_cast %161 : i32 to index
    %163 = memref.load %arg2[%162] : memref<32xi32, #tpu.memory_space<smem>>
    %c2_i32_81 = arith.constant 2 : i32
    %164 = arith.muli %c2_i32_81, %8 : i32
    %c12_i32_82 = arith.constant 12 : i32
    %165 = arith.addi %164, %c12_i32_82 : i32
    %c1_i32_83 = arith.constant 1 : i32
    %166 = arith.addi %165, %c1_i32_83 : i32
    %167 = arith.index_cast %166 : i32 to index
    %168 = memref.load %arg2[%167] : memref<32xi32, #tpu.memory_space<smem>>
    %c0_84 = arith.constant 0 : index
    %169 = arith.index_cast %163 : i32 to index
    %c0_85 = arith.constant 0 : index
    %170 = vector.load %arg5[%c0_84, %169, %c0_85] : memref<2x7x256xf32, #tpu.memory_space<vmem>>, vector<2x1x256xf32>
    %c0_86 = arith.constant 0 : index
    %171 = arith.index_cast %168 : i32 to index
    %c0_87 = arith.constant 0 : index
    %172 = vector.load %arg5[%c0_86, %171, %c0_87] : memref<2x7x256xf32, #tpu.memory_space<vmem>>, vector<2x1x256xf32>
    %c0_88 = arith.constant 0 : index
    %173 = arith.index_cast %163 : i32 to index
    %c0_89 = arith.constant 0 : index
    %174 = vector.load %arg6[%c0_88, %173, %c0_89] : memref<2x7x256xf32, #tpu.memory_space<vmem>>, vector<2x1x256xf32>
    %c0_90 = arith.constant 0 : index
    %175 = arith.index_cast %168 : i32 to index
    %c0_91 = arith.constant 0 : index
    %176 = vector.load %arg6[%c0_90, %175, %c0_91] : memref<2x7x256xf32, #tpu.memory_space<vmem>>, vector<2x1x256xf32>
    %177 = vector.extract_strided_slice %5 {offsets = [0, 6, 0], sizes = [2, 1, 256], strides = [1, 1, 1]} : vector<2x8x256xf32> to vector<2x1x256xf32>
    %178 = arith.mulf %170, %176 : vector<2x1x256xf32>
    %179 = arith.subf %177, %178 : vector<2x1x256xf32>
    %180 = arith.mulf %172, %174 : vector<2x1x256xf32>
    %181 = arith.subf %179, %180 : vector<2x1x256xf32>
    %182 = arith.mulf %181, %181 : vector<2x1x256xf32>
    %183 = vector.shape_cast %182 : vector<2x1x256xf32> to vector<2x256xf32>
    %184 = arith.addf %159, %183 : vector<2x256xf32>
    %c2_i32_92 = arith.constant 2 : i32
    %185 = arith.muli %c2_i32_92, %8 : i32
    %c14_i32 = arith.constant 14 : i32
    %186 = arith.addi %185, %c14_i32 : i32
    %187 = arith.index_cast %186 : i32 to index
    %188 = memref.load %arg2[%187] : memref<32xi32, #tpu.memory_space<smem>>
    %c2_i32_93 = arith.constant 2 : i32
    %189 = arith.muli %c2_i32_93, %8 : i32
    %c14_i32_94 = arith.constant 14 : i32
    %190 = arith.addi %189, %c14_i32_94 : i32
    %c1_i32_95 = arith.constant 1 : i32
    %191 = arith.addi %190, %c1_i32_95 : i32
    %192 = arith.index_cast %191 : i32 to index
    %193 = memref.load %arg2[%192] : memref<32xi32, #tpu.memory_space<smem>>
    %c0_96 = arith.constant 0 : index
    %194 = arith.index_cast %188 : i32 to index
    %c0_97 = arith.constant 0 : index
    %195 = vector.load %arg5[%c0_96, %194, %c0_97] : memref<2x7x256xf32, #tpu.memory_space<vmem>>, vector<2x1x256xf32>
    %c0_98 = arith.constant 0 : index
    %196 = arith.index_cast %193 : i32 to index
    %c0_99 = arith.constant 0 : index
    %197 = vector.load %arg5[%c0_98, %196, %c0_99] : memref<2x7x256xf32, #tpu.memory_space<vmem>>, vector<2x1x256xf32>
    %c0_100 = arith.constant 0 : index
    %198 = arith.index_cast %188 : i32 to index
    %c0_101 = arith.constant 0 : index
    %199 = vector.load %arg6[%c0_100, %198, %c0_101] : memref<2x7x256xf32, #tpu.memory_space<vmem>>, vector<2x1x256xf32>
    %c0_102 = arith.constant 0 : index
    %200 = arith.index_cast %193 : i32 to index
    %c0_103 = arith.constant 0 : index
    %201 = vector.load %arg6[%c0_102, %200, %c0_103] : memref<2x7x256xf32, #tpu.memory_space<vmem>>, vector<2x1x256xf32>
    %202 = vector.extract_strided_slice %5 {offsets = [0, 7, 0], sizes = [2, 1, 256], strides = [1, 1, 1]} : vector<2x8x256xf32> to vector<2x1x256xf32>
    %203 = arith.mulf %195, %201 : vector<2x1x256xf32>
    %204 = arith.subf %202, %203 : vector<2x1x256xf32>
    %205 = arith.mulf %197, %199 : vector<2x1x256xf32>
    %206 = arith.subf %204, %205 : vector<2x1x256xf32>
    %207 = arith.mulf %206, %206 : vector<2x1x256xf32>
    %208 = vector.shape_cast %207 : vector<2x1x256xf32> to vector<2x256xf32>
    %209 = arith.addf %184, %208 : vector<2x256xf32>
    %c0_104 = arith.constant 0 : index
    %c0_105 = arith.constant 0 : index
    %c0_106 = arith.constant 0 : index
    %210 = vector.load %arg7[%c0_104, %c0_105, %c0_106] : memref<1x2x256xf32, #tpu.memory_space<vmem>>, vector<1x2x256xf32>
    %211 = vector.shape_cast %210 : vector<1x2x256xf32> to vector<2x256xf32>
    %212 = arith.addf %211, %209 : vector<2x256xf32>
    %c0_107 = arith.constant 0 : index
    %c0_108 = arith.constant 0 : index
    %c0_109 = arith.constant 0 : index
    %213 = vector.load %arg7[%c0_107, %c0_108, %c0_109] : memref<1x2x256xf32, #tpu.memory_space<vmem>>, vector<1x2x256xf32>
    %214 = vector.shape_cast %213 : vector<1x2x256xf32> to vector<2x256xf32>
    %215 = vector.shape_cast %212 : vector<2x256xf32> to vector<1x2x256xf32>
    tpu.vector_store %arg7[%c0_107, %c0_108, %c0_109], %215 {strides = array<i32>} : memref<1x2x256xf32, #tpu.memory_space<vmem>>, vector<1x2x256xf32>,
    return
  }
  func.func @transform_0(%arg0: i32, %arg1: i32, %arg2: memref<32xi32, #tpu.memory_space<smem>>) -> (i32, i32, i32) {
    %c1_i32 = arith.constant 1 : i32
    %0 = arith.muli %arg0, %c1_i32 : i32
    %1 = arith.addi %0, %arg1 : i32
    %c0_i32 = arith.constant 0 : i32
    %c0_i32_0 = arith.constant 0 : i32
    %c0_i32_1 = arith.constant 0 : i32
    return %c0_i32, %1, %c0_i32_0 : i32, i32, i32
  }
  func.func @transform_1(%arg0: i32, %arg1: i32, %arg2: memref<32xi32, #tpu.memory_space<smem>>) -> (i32, i32, i32) {
    %c1_i32 = arith.constant 1 : i32
    %0 = arith.muli %arg0, %c1_i32 : i32
    %1 = arith.addi %0, %arg1 : i32
    %c0_i32 = arith.constant 0 : i32
    %c0_i32_0 = arith.constant 0 : i32
    %c0_i32_1 = arith.constant 0 : i32
    return %c0_i32, %1, %c0_i32_0 : i32, i32, i32
  }
  func.func @transform_2(%arg0: i32, %arg1: i32, %arg2: memref<32xi32, #tpu.memory_space<smem>>) -> (i32, i32, i32) {
    %c0_i32 = arith.constant 0 : i32
    %c0_i32_0 = arith.constant 0 : i32
    %c0_i32_1 = arith.constant 0 : i32
    %c0_i32_2 = arith.constant 0 : i32
    return %c0_i32, %c0_i32_0, %c0_i32_1 : i32, i32, i32
  }
  func.func @transform_3(%arg0: i32, %arg1: i32, %arg2: memref<32xi32, #tpu.memory_space<smem>>) -> (i32, i32, i32) {
    %c0_i32 = arith.constant 0 : i32
    %c0_i32_0 = arith.constant 0 : i32
    %c0_i32_1 = arith.constant 0 : i32
    %c0_i32_2 = arith.constant 0 : i32
    return %c0_i32, %c0_i32_0, %c0_i32_1 : i32, i32, i32
  }
  func.func @transform_4(%arg0: i32, %arg1: i32, %arg2: memref<32xi32, #tpu.memory_space<smem>>) -> (i32, i32, i32) {
    %c0_i32 = arith.constant 0 : i32
    %c0_i32_0 = arith.constant 0 : i32
    %c0_i32_1 = arith.constant 0 : i32
    return %arg0, %c0_i32, %c0_i32_0 : i32, i32, i32
  }
}

</mosaic_0001>

<llo_original>
// kernel: tpu_custom_call.1
$region0: #{tpu_custom_call.1}
  #allocation0 [shape = 'u32[]', space=smem, size = 0x4, offset = 0x4, fixed_abs, tag = 'smem constant byte address 0x4 - core index']
  #allocation1 [shape = 'u32[144,128]{1,0:T(1,128)}', space=vmem, size = 0x12000, scoped, tag = 'internal scratch']
  #allocation2 [shape = 's32[1]{0}', space=sflag, size = 0x4, scoped, tag = 'scoped memory for tpu_custom_call.1']
  #allocation3 [shape = 'u8[512]{0}', space=smem, size = 0x200, scoped, tag = 'prefetched SMEM operand 0']
  %s0 = inlined_call_operand.vmem [shape: s32[32], index: 0, kind: input, shape index: {}]
  %s1 = inlined_call_operand.vmem [shape: f32[2,16,256], index: 1, kind: input, shape index: {}]
  %s2 = inlined_call_operand.hbm [shape: f32[2,16,256], index: 2, kind: input, shape index: {}]
  %s3 = inlined_call_operand.vmem [shape: f32[2,7,256], index: 3, kind: input, shape index: {}]
  %s4 = inlined_call_operand.vmem [shape: f32[2,7,256], index: 4, kind: input, shape index: {}]
  %s5 = inlined_call_operand.hbm [shape: f32[2,2,256], index: 5, kind: output, shape index: {}]
  %s6 = sld [smem:[#allocation0]]
  $region80: #{tpu_custom_call.1} parent=0
    _
  %s8 = ssub.s32 1, %s6
  %s9 = scalar_select 0, %s8, %s6
  %s10 = sshll.u32 %s0, 4
  %s11 = int_to_ptr.vmem [resolvable:$true] %s10
  %13 = dma.vmem_to_smem %s11, 16, [#allocation3], [#allocation2]
  %14 = dma.done [#allocation2], 16
  %15 = sfence
  $region1: #{tpu_custom_call.1} parent=0
    #allocation4 [shape = 'u8[32768]{0}', space=vmem, size = 0x8000, scoped, tag = 'input window, operand 1']
    #allocation5 [shape = 'u8[32768]{0}', space=vmem, size = 0x8000, scoped, tag = 'input window, operand 2']
    #allocation6 [shape = 's32[2]{0}', space=sflag, size = 0x8, scoped, tag = 'scoped memory for tpu_custom_call.1']
    #allocation7 [shape = 's32[2]{0}', space=sflag, size = 0x8, scoped, tag = 'scoped memory for tpu_custom_call.1']
    #allocation8 [shape = 'u8[4096]{0}', space=vmem, size = 0x1000, scoped, tag = 'output window, operand 0']
    %16 = vsyncpa [#allocation6], 0
    %s17 = scalar_lea.sflag [#allocation6], 1
    %18 = vsyncpa %s17, 0
    %19 = vsyncpa [#allocation7], 0
    %s20 = scalar_lea.sflag [#allocation7], 1
    %21 = vsyncpa %s20, 0
    loop: start=0, step=1, limit=4
    $region2: #{tpu_custom_call.1} parent=1 // loop_pre_header
      _
    $region3: #{tpu_custom_call.1} parent=1 // loop_header
      %s23 = sphi 0, %s27
      %p24 = scmp.ge.s32.totalorder %s23, 4
      %s30 = sphi 0, %s42
      %s31 = sphi 0, %s38
      %s32 = sphi 0, %s30
      %s33 = sphi 0, %s31
      %s34 = sphi 0, %s32
      %s35 = sphi 0, %s33
      %s47 = sphi 0, %s49
      %s50 = sphi 0, %s47
      %s51 = sphi 0, %s50
      %s67 = sphi 0, %s51
      %s75 = sphi 0, %s77
      %s78 = sphi 0, %s75
      %s79 = sphi 0, %s78
      %s95 = sphi 0, %s79
      %s99 = sphi 0, %s99
      %s101 = sphi 0, %s99
      %s102 = sphi 0, %s101
      %s116 = sphi 0, %s102
      %s120 = sphi 0, %s120
      %s122 = sphi 0, %s120
      %s123 = sphi 0, %s122
      %s137 = sphi 0, %s123
      %s143 = sphi 0, %s145
      %s146 = sphi 0, %s143
      %s147 = sphi 0, %s146
      %s163 = sphi 0, %s147
    $region4: #{tpu_custom_call.1} parent=1 // loop_header_branch
      %26 = sbr.rel (%p24) target = $region8
    $region5: #{tpu_custom_call.1} parent=1 // loop_body
      %s28 = ssub.s32 %s23, 1
      %s29 = ssub.s32 %s23, 2
      %s36 = sadd.s32 1, %s31
      %p37 = scmp.ge.s32.totalorder %s36, 1
      %s38 = scalar_select %p37, 0, %s36
      %s39 = sadd.s32 1, %s30
      %s40 = scalar_select %p37, %s39, %s30
      %p41 = scmp.ge.s32.totalorder %s40, 2
      %s42 = scalar_select %p41, 0, %s40
      %s43 = sadd.s32 %s30, %s31
      %s44 = sadd.s32 %s42, %s38
      %s45 = ssub.s32 %s43, %s44
      %p46 = scmp.eq.s32.totalorder %s45, 0
      %s48 = sadd.s32 %s47, 1
      %s49 = scalar_select %p46, %s47, %s48
      %p52 = pneg %p46
      %p53 = scmp.eq.s32.totalorder %s23, 1
      %p54 = por %p52, %p53
      %p55 = scmp.ne.s32.totalorder %s47, %s50
      %p56 = scmp.eq.s32.totalorder %s23, 0
      %p57 = por %p55, %p56
      %p58 = scmp.ne.s32.totalorder %s47, %s50
      %p59 = scmp.eq.s32.totalorder %s28, 1
      %p60 = por %p58, %p59
      %p61 = scmp.ne.s32.totalorder %s50, %s51
      %p62 = scmp.eq.s32.totalorder %s28, 0
      %p63 = por %p61, %p62
      %p64 = scmp.ne.s32.totalorder %s50, %s51
      %p65 = scmp.eq.s32.totalorder %s29, 1
      %p66 = por %p64, %p65
      %p68 = scmp.ne.s32.totalorder %s51, %s67
      %p69 = scmp.eq.s32.totalorder %s29, 0
      %p70 = por %p68, %p69
      %s71 = sadd.s32 %s30, %s31
      %s72 = sadd.s32 %s42, %s38
      %s73 = ssub.s32 %s71, %s72
      %p74 = scmp.eq.s32.totalorder %s73, 0
      %s76 = sadd.s32 %s75, 1
      %s77 = scalar_select %p74, %s75, %s76
      %p80 = pneg %p74
      %p81 = scmp.eq.s32.totalorder %s23, 1
      %p82 = por %p80, %p81
      %p83 = scmp.ne.s32.totalorder %s75, %s78
      %p84 = scmp.eq.s32.totalorder %s23, 0
      %p85 = por %p83, %p84
      %p86 = scmp.ne.s32.totalorder %s75, %s78
      %p87 = scmp.eq.s32.totalorder %s28, 1
      %p88 = por %p86, %p87
      %p89 = scmp.ne.s32.totalorder %s78, %s79
      %p90 = scmp.eq.s32.totalorder %s28, 0
      %p91 = por %p89, %p90
      %p92 = scmp.ne.s32.totalorder %s78, %s79
      %p93 = scmp.eq.s32.totalorder %s29, 1
      %p94 = por %p92, %p93
      %p96 = scmp.ne.s32.totalorder %s79, %s95
      %p97 = scmp.eq.s32.totalorder %s29, 0
      %p98 = por %p96, %p97
      %s100 = sadd.s32 %s99, 1
      %p103 = scmp.eq.s32.totalorder %s23, 1
      %p104 = scmp.ne.s32.totalorder %s99, %s101
      %p105 = scmp.eq.s32.totalorder %s23, 0
      %p106 = por %p104, %p105
      %p107 = scmp.ne.s32.totalorder %s99, %s101
      %p108 = scmp.eq.s32.totalorder %s28, 1
      %p109 = por %p107, %p108
      %p110 = scmp.ne.s32.totalorder %s101, %s102
      %p111 = scmp.eq.s32.totalorder %s28, 0
      %p112 = por %p110, %p111
      %p113 = scmp.ne.s32.totalorder %s101, %s102
      %p114 = scmp.eq.s32.totalorder %s29, 1
      %p115 = por %p113, %p114
      %p117 = scmp.ne.s32.totalorder %s102, %s116
      %p118 = scmp.eq.s32.totalorder %s29, 0
      %p119 = por %p117, %p118
      %s121 = sadd.s32 %s120, 1
      %p124 = scmp.eq.s32.totalorder %s23, 1
      %p125 = scmp.ne.s32.totalorder %s120, %s122
      %p126 = scmp.eq.s32.totalorder %s23, 0
      %p127 = por %p125, %p126
      %p128 = scmp.ne.s32.totalorder %s120, %s122
      %p129 = scmp.eq.s32.totalorder %s28, 1
      %p130 = por %p128, %p129
      %p131 = scmp.ne.s32.totalorder %s122, %s123
      %p132 = scmp.eq.s32.totalorder %s28, 0
      %p133 = por %p131, %p132
      %p134 = scmp.ne.s32.totalorder %s122, %s123
      %p135 = scmp.eq.s32.totalorder %s29, 1
      %p136 = por %p134, %p135
      %p138 = scmp.ne.s32.totalorder %s123, %s137
      %p139 = scmp.eq.s32.totalorder %s29, 0
      %p140 = por %p138, %p139
      %s141 = ssub.s32 %s30, %s42
      %p142 = scmp.eq.s32.totalorder %s141, 0
      %s144 = sadd.s32 %s143, 1
      %s145 = scalar_select %p142, %s143, %s144
      %p148 = pneg %p142
      %p149 = scmp.eq.s32.totalorder %s23, 1
      %p150 = por %p148, %p149
      %p151 = scmp.ne.s32.totalorder %s143, %s146
      %p152 = scmp.eq.s32.totalorder %s23, 0
      %p153 = por %p151, %p152
      %p154 = scmp.ne.s32.totalorder %s143, %s146
      %p155 = scmp.eq.s32.totalorder %s28, 1
      %p156 = por %p154, %p155
      %p157 = scmp.ne.s32.totalorder %s146, %s147
      %p158 = scmp.eq.s32.totalorder %s28, 0
      %p159 = por %p157, %p158
      %p160 = scmp.ne.s32.totalorder %s146, %s147
      %p161 = scmp.eq.s32.totalorder %s29, 1
      %p162 = por %p160, %p161
      %p164 = scmp.ne.s32.totalorder %s147, %s163
      %p165 = scmp.eq.s32.totalorder %s29, 0
      %p166 = por %p164, %p165
      %p167 = scmp.le.s32.totalorder 1, %s23
      %p168 = scmp.lt.s32.totalorder %s23, 3
      %p169 = pnand %p167, %p168
      %p170 = pneg %p169
      // Predicated region
      $region9: #{tpu_custom_call.1} parent=5 // pred_check
        _
      $region10: #{tpu_custom_call.1} parent=5 // pred_check_branch
        %172 = sbr.rel (%p169) target = $region12
      $region11: #{tpu_custom_call.1} parent=5 // pred_region
        %s173 = ssub.s32 %s23, 1
        // Predicated region
        $region13: #{tpu_custom_call.1} parent=11 // pred_check
          %p174 = pneg %p112
        $region14: #{tpu_custom_call.1} parent=11 // pred_check_branch
          %176 = sbr.rel (%p174) target = $region16
        $region15: #{tpu_custom_call.1} parent=11 // pred_region
          _
        $region16: #{tpu_custom_call.1} parent=11 // pred_fallthru
          _
        // Predicated region
        $region17: #{tpu_custom_call.1} parent=11 // pred_check
          %p177 = pneg %p133
        $region18: #{tpu_custom_call.1} parent=11 // pred_check_branch
          %179 = sbr.rel (%p177) target = $region20
        $region19: #{tpu_custom_call.1} parent=11 // pred_region
          _
        $region20: #{tpu_custom_call.1} parent=11 // pred_fallthru
          _
      $region12: #{tpu_custom_call.1} parent=5 // pred_fallthru
        _
      %p180 = scmp.lt.s32.totalorder %s23, 2
      // Predicated region
      $region21: #{tpu_custom_call.1} parent=5 // pred_check
        %p181 = pneg %p180
      $region22: #{tpu_custom_call.1} parent=5 // pred_check_branch
        %183 = sbr.rel (%p181) target = $region24
      $region23: #{tpu_custom_call.1} parent=5 // pred_region
        // Predicated region
        $region25: #{tpu_custom_call.1} parent=23 // pred_check
          %p184 = pneg %p57
        $region26: #{tpu_custom_call.1} parent=23 // pred_check_branch
          %186 = sbr.rel (%p184) target = $region28
        $region27: #{tpu_custom_call.1} parent=23 // pred_region
          %s187 = sand.u32 %s47, 1
          %s188 = sand.u32 %s47, 1
          %s189 = smul.addr %s188, 32
          %s190 = scalar_lea.vmem [#allocation4], %s189
          %s191 = sadd.s32 %s30, %s31
          %s192 = smul.addr %s191, 2
          %s193 = smul.addr %s192, 8
          %s194 = scalar_lea.vmem %s1, %s193
          // Predicated region
          $region29: #{tpu_custom_call.1} parent=27 // pred_check
            _
          $region30: #{tpu_custom_call.1} parent=27 // pred_check_branch
            %196 = sbr.rel (0) target = $region32
          $region31: #{tpu_custom_call.1} parent=27 // pred_region
            // Predicated region
            $region33: #{tpu_custom_call.1} parent=31 // pred_check
              _
            $region34: #{tpu_custom_call.1} parent=31 // pred_check_branch
              %198 = sbr.rel (0) target = $region36
            $region35: #{tpu_custom_call.1} parent=31 // pred_region
              loop: start=0, step=1, limit=1
              $region37: #{tpu_custom_call.1} parent=35 // loop_pre_header
                _
              $region38: #{tpu_custom_call.1} parent=35 // loop_header
                %s200 = sphi 0, %s204
                %p201 = scmp.ge.s32.totalorder %s200, 1
                %s205 = sphi %s194, %s194
                %s206 = sphi %s190, %s190
              $region39: #{tpu_custom_call.1} parent=35 // loop_header_branch
                %203 = sbr.rel (%p201) target = $region43
              $region40: #{tpu_custom_call.1} parent=35 // loop_body
                %v207 = vld [vmem:[%s205] sm:$0xff]
                %208 = vst [vmem:[%s206] sm:$0xff] %v207
                %v209 = vld [vmem:[%s205 + $0x8] sm:$0xff]
                %210 = vst [vmem:[%s206 + $0x8] sm:$0xff] %v209
                %v211 = vld [vmem:[%s205 + $0x20] sm:$0xff]
                %212 = vst [vmem:[%s206 + $0x10] sm:$0xff] %v211
                %v213 = vld [vmem:[%s205 + $0x28] sm:$0xff]
                %214 = vst [vmem:[%s206 + $0x18] sm:$0xff] %v213
              $region41: #{tpu_custom_call.1} parent=35 // loop_footer
                %s204 = sadd.s32 1, %s200
              $region42: #{tpu_custom_call.1} parent=35 // loop_footer_branch
                %199 = sbr.rel target = $region38
              $region43: #{tpu_custom_call.1} parent=35 // loop_exit
                _
            $region36: #{tpu_custom_call.1} parent=31 // pred_fallthru
              _
            // Predicated region
            $region44: #{tpu_custom_call.1} parent=31 // pred_check
              _
            $region45: #{tpu_custom_call.1} parent=31 // pred_check_branch
              %216 = sbr.rel target = $region47
            $region46: #{tpu_custom_call.1} parent=31 // pred_region
              _
            $region47: #{tpu_custom_call.1} parent=31 // pred_fallthru
              _
          $region32: #{tpu_custom_call.1} parent=27 // pred_fallthru
            _
          %217 = vnop
        $region28: #{tpu_custom_call.1} parent=23 // pred_fallthru
          _
        // Predicated region
        $region48: #{tpu_custom_call.1} parent=23 // pred_check
          %p218 = pneg %p85
        $region49: #{tpu_custom_call.1} parent=23 // pred_check_branch
          %220 = sbr.rel (%p218) target = $region51
        $region50: #{tpu_custom_call.1} parent=23 // pred_region
          %s221 = sand.u32 %s75, 1
          %s222 = scalar_lea.sflag [#allocation6], %s221
          %s223 = sand.u32 %s75, 1
          %s224 = smul.addr %s223, 32
          %s225 = scalar_lea.vmem [#allocation5], %s224
          %s226 = sadd.s32 %s30, %s31
          %s228 = ssub.s32 512, 512
          %229 = vsyncadd %s222, %s228
          %s230 = smul.addr %s226, 2
          %s231 = smul.addr %s230, 128
          %s232 = scalar_lea.hbm %s2, %s231
          %s233 = sshll.u32 %s225, 4
          %s234 = int_to_ptr.vmem [resolvable:$true] %s233
          %239 = dma.hbm_to_vmem [thread:$0]  %s232, 512, %s234, %s222, 512, 256, 16
        $region51: #{tpu_custom_call.1} parent=23 // pred_fallthru
          _
      $region24: #{tpu_custom_call.1} parent=5 // pred_fallthru
        _
      %p240 = scmp.le.s32.totalorder 1, %s23
      %p241 = scmp.lt.s32.totalorder %s23, 3
      %p242 = pnand %p240, %p241
      %p243 = pneg %p242
      // Predicated region
      $region52: #{tpu_custom_call.1} parent=5 // pred_check
        _
      $region53: #{tpu_custom_call.1} parent=5 // pred_check_branch
        %245 = sbr.rel (%p242) target = $region55
      $region54: #{tpu_custom_call.1} parent=5 // pred_region
        %s246 = ssub.s32 %s23, 1
        %s247 = sand.u32 %s50, 1
        %s248 = sand.u32 %s50, 1
        %s249 = smul.addr %s248, 32
        %s250 = scalar_lea.vmem [#allocation4], %s249
        // Predicated region
        $region56: #{tpu_custom_call.1} parent=54 // pred_check
          %p251 = pneg %p63
        $region57: #{tpu_custom_call.1} parent=54 // pred_check_branch
          %253 = sbr.rel (%p251) target = $region59
        $region58: #{tpu_custom_call.1} parent=54 // pred_region
          _
        $region59: #{tpu_custom_call.1} parent=54 // pred_fallthru
          _
        %s254 = sand.u32 %s78, 1
        %s255 = scalar_lea.sflag [#allocation6], %s254
        %s256 = sand.u32 %s78, 1
        %s257 = smul.addr %s256, 32
        %s258 = scalar_lea.vmem [#allocation5], %s257
        // Predicated region
        $region60: #{tpu_custom_call.1} parent=54 // pred_check
          %p259 = pneg %p91
        $region61: #{tpu_custom_call.1} parent=54 // pred_check_branch
          %261 = sbr.rel (%p259) target = $region63
        $region62: #{tpu_custom_call.1} parent=54 // pred_region
          %262 = dma.done %s255, 512
        $region63: #{tpu_custom_call.1} parent=54 // pred_fallthru
          _
        %s263 = sand.u32 %s50, 1
        %s264 = sand.u32 %s50, 1
        %s265 = smul.addr %s264, 32
        %s266 = scalar_lea.vmem [#allocation4], %s265
        %p267 = pneg %p63
        %p268 = pneg %p60
        %s269 = sand.u32 %s78, 1
        %s270 = scalar_lea.sflag [#allocation6], %s269
        %s271 = sand.u32 %s78, 1
        %s272 = smul.addr %s271, 32
        %s273 = scalar_lea.vmem [#allocation5], %s272
        %p274 = pneg %p91
        %p275 = pneg %p88
        %p276 = pneg %p112
        %p277 = pneg %p109
        %p278 = pneg %p133
        %p279 = pneg %p130
        %p280 = pneg %p159
        %p281 = pneg %p156
        %s282 = sand.u32 %s146, 1
        %s283 = scalar_lea.sflag [#allocation7], %s282
        %s284 = sand.u32 %s146, 1
        %s285 = smul.addr %s284, 4
        %s286 = scalar_lea.vmem [#allocation8], %s285
        %s287 = sadd.s32 %s32, %s33
        %s288 = sadd.s32 %s32, %s33
        %p289 = scmp.eq.s32.totalorder %s33, 0
        // Predicated region
        $region64: #{tpu_custom_call.1} parent=54 // pred_check
          %p290 = pneg %p289
        $region65: #{tpu_custom_call.1} parent=54 // pred_check_branch
          %292 = sbr.rel (%p290) target = $region67
        $region66: #{tpu_custom_call.1} parent=54 // pred_region
          %293 = vst [vmem:[%s286] sm:$0xf] 0.0
        $region67: #{tpu_custom_call.1} parent=54 // pred_fallthru
          _
        %v294 = vld [vmem:[%s258] sm:$0xff]
        %v295 = vld [vmem:[%s258 + $0x8] sm:$0xff]
        %v296 = vld [vmem:[%s258 + $0x10] sm:$0xff]
        %v297 = vld [vmem:[%s258 + $0x18] sm:$0xff]
        %v298 = vld [vmem:[%s250] sm:$0xff]
        %v299 = vld [vmem:[%s250 + $0x8] sm:$0xff]
        %v300 = vld [vmem:[%s250 + $0x10] sm:$0xff]
        %v301 = vld [vmem:[%s250 + $0x18] sm:$0xff]
        %v302 = vsub.f32 %v298, %v294
        %v303 = vsub.f32 %v299, %v295
        %v304 = vsub.f32 %v300, %v296
        %v305 = vsub.f32 %v301, %v297
        %s306 = sadd.s32 %s32, %s33
        %s307 = smul.u32 %s306, 16
        %s308 = sld [smem:[#allocation3 + %s307]]
        %s309 = sadd.s32 %s307, 1
        %s310 = sld [smem:[#allocation3 + %s309]]
        %s311 = sshra.s32 %s308, 3
        %s312 = sand.u32 %s308, 7
        %s313 = sshra.s32 %s308, 3
        %s314 = sand.u32 %s308, 7
        %s315 = smul.u32 %s311, 2
        %s316 = smul.u32 %s315, 8
        %s317 = sadd.s32 %s316, %s314
        %s318 = scalar_lea.vmem %s3, %s317
        %v319 = vld [vmem:[%s318] ss:$8 sm:$0x3]
        %s320 = sadd.s32 16, %s317
        %s321 = scalar_lea.vmem %s3, %s320
        %v322 = vld [vmem:[%s321] ss:$8 sm:$0x3]
        %s323 = sshra.s32 %s310, 3
        %s324 = sand.u32 %s310, 7
        %s325 = sshra.s32 %s310, 3
        %s326 = sand.u32 %s310, 7
        %s327 = smul.u32 %s323, 2
        %s328 = smul.u32 %s327, 8
        %s329 = sadd.s32 %s328, %s326
        %s330 = scalar_lea.vmem %s3, %s329
        %v331 = vld [vmem:[%s330] ss:$8 sm:$0x3]
        %s332 = sadd.s32 16, %s329
        %s333 = scalar_lea.vmem %s3, %s332
        %v334 = vld [vmem:[%s333] ss:$8 sm:$0x3]
        %s335 = scalar_lea.vmem %s4, %s317
        %v336 = vld [vmem:[%s335] ss:$8 sm:$0x3]
        %s337 = scalar_lea.vmem %s4, %s320
        %v338 = vld [vmem:[%s337] ss:$8 sm:$0x3]
        %s339 = scalar_lea.vmem %s4, %s329
        %v340 = vld [vmem:[%s339] ss:$8 sm:$0x3]
        %s341 = scalar_lea.vmem %s4, %s332
        %v342 = vld [vmem:[%s341] ss:$8 sm:$0x3]
        %v343 = vmul.f32 %v319, %v340
        %v344 = vmul.f32 %v322, %v342
        %v347 = vlaneseq
        %v348 = vshrl.u32 %v347, 7
        %v349 = vsub.s32 0, %v348
        %v350 = vrot.slane %v343, %v349
        %v351 = vlaneseq
        %v352 = vshrl.u32 %v351, 7
        %v353 = vsub.s32 1, %v352
        %v354 = vrot.slane %v343, %v353
        %v355 = vlaneseq
        %v356 = vshrl.u32 %v355, 7
        %v357 = vsub.s32 0, %v356
        %v358 = vrot.slane %v344, %v357
        %v359 = vlaneseq
        %v360 = vshrl.u32 %v359, 7
        %v361 = vsub.s32 1, %v360
        %v362 = vrot.slane %v344, %v361
        %v367 = vsub.f32 %v302, %v350
        %v368 = vsub.f32 %v303, %v354
        %v369 = vsub.f32 %v304, %v358
        %v370 = vsub.f32 %v305, %v362
        %v371 = vmul.f32 %v331, %v336
        %v372 = vmul.f32 %v334, %v338
        %v375 = vlaneseq
        %v376 = vshrl.u32 %v375, 7
        %v377 = vsub.s32 0, %v376
        %v378 = vrot.slane %v371, %v377
        %v379 = vlaneseq
        %v380 = vshrl.u32 %v379, 7
        %v381 = vsub.s32 1, %v380
        %v382 = vrot.slane %v371, %v381
        %v383 = vlaneseq
        %v384 = vshrl.u32 %v383, 7
        %v385 = vsub.s32 0, %v384
        %v386 = vrot.slane %v372, %v385
        %v387 = vlaneseq
        %v388 = vshrl.u32 %v387, 7
        %v389 = vsub.s32 1, %v388
        %v390 = vrot.slane %v372, %v389
        %v395 = vsub.f32 %v367, %v378
        %v396 = vsub.f32 %v368, %v382
        %v397 = vsub.f32 %v369, %v386
        %v398 = vsub.f32 %v370, %v390
        %v399 = vmul.f32 %v395, %v395
        %v400 = vmul.f32 %v396, %v396
        %v401 = vmul.f32 %v397, %v397
        %v402 = vmul.f32 %v398, %v398
        %v403 = vadd.f32 %v399, 0.0
        %v404 = vadd.f32 %v400, 0.0
        %v405 = vadd.f32 %v401, 0.0
        %v406 = vadd.f32 %v402, 0.0
        %s407 = sadd.s32 %s307, 2
        %s408 = sld [smem:[#allocation3 + %s407]]
        %s409 = sadd.s32 %s307, 3
        %s410 = sld [smem:[#allocation3 + %s409]]
        %s411 = sshra.s32 %s408, 3
        %s412 = sand.u32 %s408, 7
        %s413 = sshra.s32 %s408, 3
        %s414 = sand.u32 %s408, 7
        %s415 = smul.u32 %s411, 2
        %s416 = smul.u32 %s415, 8
        %s417 = sadd.s32 %s416, %s414
        %s418 = scalar_lea.vmem %s3, %s417
        %v419 = vld [vmem:[%s418] ss:$8 sm:$0x3]
        %s420 = sadd.s32 16, %s417
        %s421 = scalar_lea.vmem %s3, %s420
        %v422 = vld [vmem:[%s421] ss:$8 sm:$0x3]
        %s423 = sshra.s32 %s410, 3
        %s424 = sand.u32 %s410, 7
        %s425 = sshra.s32 %s410, 3
        %s426 = sand.u32 %s410, 7
        %s427 = smul.u32 %s423, 2
        %s428 = smul.u32 %s427, 8
        %s429 = sadd.s32 %s428, %s426
        %s430 = scalar_lea.vmem %s3, %s429
        %v431 = vld [vmem:[%s430] ss:$8 sm:$0x3]
        %s432 = sadd.s32 16, %s429
        %s433 = scalar_lea.vmem %s3, %s432
        %v434 = vld [vmem:[%s433] ss:$8 sm:$0x3]
        %s435 = scalar_lea.vmem %s4, %s417
        %v436 = vld [vmem:[%s435] ss:$8 sm:$0x3]
        %s437 = scalar_lea.vmem %s4, %s420
        %v438 = vld [vmem:[%s437] ss:$8 sm:$0x3]
        %s439 = scalar_lea.vmem %s4, %s429
        %v440 = vld [vmem:[%s439] ss:$8 sm:$0x3]
        %s441 = scalar_lea.vmem %s4, %s432
        %v442 = vld [vmem:[%s441] ss:$8 sm:$0x3]
        %v443 = vmul.f32 %v419, %v440
        %v444 = vmul.f32 %v422, %v442
        %v447 = vlaneseq
        %v448 = vshrl.u32 %v447, 7
        %v449 = vsub.s32 0, %v448
        %v450 = vrot.slane %v443, %v449
        %v451 = vlaneseq
        %v452 = vshrl.u32 %v451, 7
        %v453 = vsub.s32 1, %v452
        %v454 = vrot.slane %v443, %v453
        %v455 = vlaneseq
        %v456 = vshrl.u32 %v455, 7
        %v457 = vsub.s32 0, %v456
        %v458 = vrot.slane %v444, %v457
        %v459 = vlaneseq
        %v460 = vshrl.u32 %v459, 7
        %v461 = vsub.s32 1, %v460
        %v462 = vrot.slane %v444, %v461
        %v467 = vsub.f32 %v302, %v450
        %v468 = vsub.f32 %v303, %v454
        %v469 = vsub.f32 %v304, %v458
        %v470 = vsub.f32 %v305, %v462
        %v471 = vmul.f32 %v431, %v436
        %v472 = vmul.f32 %v434, %v438
        %v475 = vlaneseq
        %v476 = vshrl.u32 %v475, 7
        %v477 = vsub.s32 0, %v476
        %v478 = vrot.slane %v471, %v477
        %v479 = vlaneseq
        %v480 = vshrl.u32 %v479, 7
        %v481 = vsub.s32 1, %v480
        %v482 = vrot.slane %v471, %v481
        %v483 = vlaneseq
        %v484 = vshrl.u32 %v483, 7
        %v485 = vsub.s32 0, %v484
        %v486 = vrot.slane %v472, %v485
        %v487 = vlaneseq
        %v488 = vshrl.u32 %v487, 7
        %v489 = vsub.s32 1, %v488
        %v490 = vrot.slane %v472, %v489
        %v495 = vsub.f32 %v467, %v478
        %v496 = vsub.f32 %v468, %v482
        %v497 = vsub.f32 %v469, %v486
        %v498 = vsub.f32 %v470, %v490
        %v499 = vmul.f32 %v495, %v495
        %v500 = vmul.f32 %v496, %v496
        %v501 = vmul.f32 %v497, %v497
        %v502 = vmul.f32 %v498, %v498
        %v507 = vrot.slane %v499, 1
        %v508 = vrot.slane %v500, 1
        %v509 = vrot.slane %v501, 1
        %v510 = vrot.slane %v502, 1
        %v515 = vadd.f32 %v403, %v507
        %v516 = vadd.f32 %v404, %v508
        %v517 = vadd.f32 %v405, %v509
        %v518 = vadd.f32 %v406, %v510
        %s519 = sadd.s32 %s307, 4
        %s520 = sld [smem:[#allocation3 + %s519]]
        %s521 = sadd.s32 %s307, 5
        %s522 = sld [smem:[#allocation3 + %s521]]
        %s523 = sshra.s32 %s520, 3
        %s524 = sand.u32 %s520, 7
        %s525 = sshra.s32 %s520, 3
        %s526 = sand.u32 %s520, 7
        %s527 = smul.u32 %s523, 2
        %s528 = smul.u32 %s527, 8
        %s529 = sadd.s32 %s528, %s526
        %s530 = scalar_lea.vmem %s3, %s529
        %v531 = vld [vmem:[%s530] ss:$8 sm:$0x3]
        %s532 = sadd.s32 16, %s529
        %s533 = scalar_lea.vmem %s3, %s532
        %v534 = vld [vmem:[%s533] ss:$8 sm:$0x3]
        %s535 = sshra.s32 %s522, 3
        %s536 = sand.u32 %s522, 7
        %s537 = sshra.s32 %s522, 3
        %s538 = sand.u32 %s522, 7
        %s539 = smul.u32 %s535, 2
        %s540 = smul.u32 %s539, 8
        %s541 = sadd.s32 %s540, %s538
        %s542 = scalar_lea.vmem %s3, %s541
        %v543 = vld [vmem:[%s542] ss:$8 sm:$0x3]
        %s544 = sadd.s32 16, %s541
        %s545 = scalar_lea.vmem %s3, %s544
        %v546 = vld [vmem:[%s545] ss:$8 sm:$0x3]
        %s547 = scalar_lea.vmem %s4, %s529
        %v548 = vld [vmem:[%s547] ss:$8 sm:$0x3]
        %s549 = scalar_lea.vmem %s4, %s532
        %v550 = vld [vmem:[%s549] ss:$8 sm:$0x3]
        %s551 = scalar_lea.vmem %s4, %s541
        %v552 = vld [vmem:[%s551] ss:$8 sm:$0x3]
        %s553 = scalar_lea.vmem %s4, %s544
        %v554 = vld [vmem:[%s553] ss:$8 sm:$0x3]
        %v555 = vmul.f32 %v531, %v552
        %v556 = vmul.f32 %v534, %v554
        %v559 = vlaneseq
        %v560 = vshrl.u32 %v559, 7
        %v561 = vsub.s32 0, %v560
        %v562 = vrot.slane %v555, %v561
        %v563 = vlaneseq
        %v564 = vshrl.u32 %v563, 7
        %v565 = vsub.s32 1, %v564
        %v566 = vrot.slane %v555, %v565
        %v567 = vlaneseq
        %v568 = vshrl.u32 %v567, 7
        %v569 = vsub.s32 0, %v568
        %v570 = vrot.slane %v556, %v569
        %v571 = vlaneseq
        %v572 = vshrl.u32 %v571, 7
        %v573 = vsub.s32 1, %v572
        %v574 = vrot.slane %v556, %v573
        %v579 = vsub.f32 %v302, %v562
        %v580 = vsub.f32 %v303, %v566
        %v581 = vsub.f32 %v304, %v570
        %v582 = vsub.f32 %v305, %v574
        %v583 = vmul.f32 %v543, %v548
        %v584 = vmul.f32 %v546, %v550
        %v587 = vlaneseq
        %v588 = vshrl.u32 %v587, 7
        %v589 = vsub.s32 0, %v588
        %v590 = vrot.slane %v583, %v589
        %v591 = vlaneseq
        %v592 = vshrl.u32 %v591, 7
        %v593 = vsub.s32 1, %v592
        %v594 = vrot.slane %v583, %v593
        %v595 = vlaneseq
        %v596 = vshrl.u32 %v595, 7
        %v597 = vsub.s32 0, %v596
        %v598 = vrot.slane %v584, %v597
        %v599 = vlaneseq
        %v600 = vshrl.u32 %v599, 7
        %v601 = vsub.s32 1, %v600
        %v602 = vrot.slane %v584, %v601
        %v607 = vsub.f32 %v579, %v590
        %v608 = vsub.f32 %v580, %v594
        %v609 = vsub.f32 %v581, %v598
        %v610 = vsub.f32 %v582, %v602
        %v611 = vmul.f32 %v607, %v607
        %v612 = vmul.f32 %v608, %v608
        %v613 = vmul.f32 %v609, %v609
        %v614 = vmul.f32 %v610, %v610
        %v619 = vrot.slane %v611, 2
        %v620 = vrot.slane %v612, 2
        %v621 = vrot.slane %v613, 2
        %v622 = vrot.slane %v614, 2
        %v627 = vadd.f32 %v515, %v619
        %v628 = vadd.f32 %v516, %v620
        %v629 = vadd.f32 %v517, %v621
        %v630 = vadd.f32 %v518, %v622
        %s631 = sadd.s32 %s307, 6
        %s632 = sld [smem:[#allocation3 + %s631]]
        %s633 = sadd.s32 %s307, 7
        %s634 = sld [smem:[#allocation3 + %s633]]
        %s635 = sshra.s32 %s632, 3
        %s636 = sand.u32 %s632, 7
        %s637 = sshra.s32 %s632, 3
        %s638 = sand.u32 %s632, 7
        %s639 = smul.u32 %s635, 2
        %s640 = smul.u32 %s639, 8
        %s641 = sadd.s32 %s640, %s638
        %s642 = scalar_lea.vmem %s3, %s641
        %v643 = vld [vmem:[%s642] ss:$8 sm:$0x3]
        %s644 = sadd.s32 16, %s641
        %s645 = scalar_lea.vmem %s3, %s644
        %v646 = vld [vmem:[%s645] ss:$8 sm:$0x3]
        %s647 = sshra.s32 %s634, 3
        %s648 = sand.u32 %s634, 7
        %s649 = sshra.s32 %s634, 3
        %s650 = sand.u32 %s634, 7
        %s651 = smul.u32 %s647, 2
        %s652 = smul.u32 %s651, 8
        %s653 = sadd.s32 %s652, %s650
        %s654 = scalar_lea.vmem %s3, %s653
        %v655 = vld [vmem:[%s654] ss:$8 sm:$0x3]
        %s656 = sadd.s32 16, %s653
        %s657 = scalar_lea.vmem %s3, %s656
        %v658 = vld [vmem:[%s657] ss:$8 sm:$0x3]
        %s659 = scalar_lea.vmem %s4, %s641
        %v660 = vld [vmem:[%s659] ss:$8 sm:$0x3]
        %s661 = scalar_lea.vmem %s4, %s644
        %v662 = vld [vmem:[%s661] ss:$8 sm:$0x3]
        %s663 = scalar_lea.vmem %s4, %s653
        %v664 = vld [vmem:[%s663] ss:$8 sm:$0x3]
        %s665 = scalar_lea.vmem %s4, %s656
        %v666 = vld [vmem:[%s665] ss:$8 sm:$0x3]
        %v667 = vmul.f32 %v643, %v664
        %v668 = vmul.f32 %v646, %v666
        %v671 = vlaneseq
        %v672 = vshrl.u32 %v671, 7
        %v673 = vsub.s32 0, %v672
        %v674 = vrot.slane %v667, %v673
        %v675 = vlaneseq
        %v676 = vshrl.u32 %v675, 7
        %v677 = vsub.s32 1, %v676
        %v678 = vrot.slane %v667, %v677
        %v679 = vlaneseq
        %v680 = vshrl.u32 %v679, 7
        %v681 = vsub.s32 0, %v680
        %v682 = vrot.slane %v668, %v681
        %v683 = vlaneseq
        %v684 = vshrl.u32 %v683, 7
        %v685 = vsub.s32 1, %v684
        %v686 = vrot.slane %v668, %v685
        %v691 = vsub.f32 %v302, %v674
        %v692 = vsub.f32 %v303, %v678
        %v693 = vsub.f32 %v304, %v682
        %v694 = vsub.f32 %v305, %v686
        %v695 = vmul.f32 %v655, %v660
        %v696 = vmul.f32 %v658, %v662
        %v699 = vlaneseq
        %v700 = vshrl.u32 %v699, 7
        %v701 = vsub.s32 0, %v700
        %v702 = vrot.slane %v695, %v701
        %v703 = vlaneseq
        %v704 = vshrl.u32 %v703, 7
        %v705 = vsub.s32 1, %v704
        %v706 = vrot.slane %v695, %v705
        %v707 = vlaneseq
        %v708 = vshrl.u32 %v707, 7
        %v709 = vsub.s32 0, %v708
        %v710 = vrot.slane %v696, %v709
        %v711 = vlaneseq
        %v712 = vshrl.u32 %v711, 7
        %v713 = vsub.s32 1, %v712
        %v714 = vrot.slane %v696, %v713
        %v719 = vsub.f32 %v691, %v702
        %v720 = vsub.f32 %v692, %v706
        %v721 = vsub.f32 %v693, %v710
        %v722 = vsub.f32 %v694, %v714
        %v723 = vmul.f32 %v719, %v719
        %v724 = vmul.f32 %v720, %v720
        %v725 = vmul.f32 %v721, %v721
        %v726 = vmul.f32 %v722, %v722
        %v731 = vrot.slane %v723, 3
        %v732 = vrot.slane %v724, 3
        %v733 = vrot.slane %v725, 3
        %v734 = vrot.slane %v726, 3
        %v739 = vadd.f32 %v627, %v731
        %v740 = vadd.f32 %v628, %v732
        %v741 = vadd.f32 %v629, %v733
        %v742 = vadd.f32 %v630, %v734
        %s743 = sadd.s32 %s307, 8
        %s744 = sld [smem:[#allocation3 + %s743]]
        %s745 = sadd.s32 %s307, 9
        %s746 = sld [smem:[#allocation3 + %s745]]
        %s747 = sshra.s32 %s744, 3
        %s748 = sand.u32 %s744, 7
        %s749 = sshra.s32 %s744, 3
        %s750 = sand.u32 %s744, 7
        %s751 = smul.u32 %s747, 2
        %s752 = smul.u32 %s751, 8
        %s753 = sadd.s32 %s752, %s750
        %s754 = scalar_lea.vmem %s3, %s753
        %v755 = vld [vmem:[%s754] ss:$8 sm:$0x3]
        %s756 = sadd.s32 16, %s753
        %s757 = scalar_lea.vmem %s3, %s756
        %v758 = vld [vmem:[%s757] ss:$8 sm:$0x3]
        %s759 = sshra.s32 %s746, 3
        %s760 = sand.u32 %s746, 7
        %s761 = sshra.s32 %s746, 3
        %s762 = sand.u32 %s746, 7
        %s763 = smul.u32 %s759, 2
        %s764 = smul.u32 %s763, 8
        %s765 = sadd.s32 %s764, %s762
        %s766 = scalar_lea.vmem %s3, %s765
        %v767 = vld [vmem:[%s766] ss:$8 sm:$0x3]
        %s768 = sadd.s32 16, %s765
        %s769 = scalar_lea.vmem %s3, %s768
        %v770 = vld [vmem:[%s769] ss:$8 sm:$0x3]
        %s771 = scalar_lea.vmem %s4, %s753
        %v772 = vld [vmem:[%s771] ss:$8 sm:$0x3]
        %s773 = scalar_lea.vmem %s4, %s756
        %v774 = vld [vmem:[%s773] ss:$8 sm:$0x3]
        %s775 = scalar_lea.vmem %s4, %s765
        %v776 = vld [vmem:[%s775] ss:$8 sm:$0x3]
        %s777 = scalar_lea.vmem %s4, %s768
        %v778 = vld [vmem:[%s777] ss:$8 sm:$0x3]
        %v779 = vmul.f32 %v755, %v776
        %v780 = vmul.f32 %v758, %v778
        %v783 = vlaneseq
        %v784 = vshrl.u32 %v783, 7
        %v785 = vsub.s32 0, %v784
        %v786 = vrot.slane %v779, %v785
        %v787 = vlaneseq
        %v788 = vshrl.u32 %v787, 7
        %v789 = vsub.s32 1, %v788
        %v790 = vrot.slane %v779, %v789
        %v791 = vlaneseq
        %v792 = vshrl.u32 %v791, 7
        %v793 = vsub.s32 0, %v792
        %v794 = vrot.slane %v780, %v793
        %v795 = vlaneseq
        %v796 = vshrl.u32 %v795, 7
        %v797 = vsub.s32 1, %v796
        %v798 = vrot.slane %v780, %v797
        %v803 = vsub.f32 %v302, %v786
        %v804 = vsub.f32 %v303, %v790
        %v805 = vsub.f32 %v304, %v794
        %v806 = vsub.f32 %v305, %v798
        %v807 = vmul.f32 %v767, %v772
        %v808 = vmul.f32 %v770, %v774
        %v811 = vlaneseq
        %v812 = vshrl.u32 %v811, 7
        %v813 = vsub.s32 0, %v812
        %v814 = vrot.slane %v807, %v813
        %v815 = vlaneseq
        %v816 = vshrl.u32 %v815, 7
        %v817 = vsub.s32 1, %v816
        %v818 = vrot.slane %v807, %v817
        %v819 = vlaneseq
        %v820 = vshrl.u32 %v819, 7
        %v821 = vsub.s32 0, %v820
        %v822 = vrot.slane %v808, %v821
        %v823 = vlaneseq
        %v824 = vshrl.u32 %v823, 7
        %v825 = vsub.s32 1, %v824
        %v826 = vrot.slane %v808, %v825
        %v831 = vsub.f32 %v803, %v814
        %v832 = vsub.f32 %v804, %v818
        %v833 = vsub.f32 %v805, %v822
        %v834 = vsub.f32 %v806, %v826
        %v835 = vmul.f32 %v831, %v831
        %v836 = vmul.f32 %v832, %v832
        %v837 = vmul.f32 %v833, %v833
        %v838 = vmul.f32 %v834, %v834
        %v843 = vrot.slane %v835, 4
        %v844 = vrot.slane %v836, 4
        %v845 = vrot.slane %v837, 4
        %v846 = vrot.slane %v838, 4
        %v851 = vadd.f32 %v739, %v843
        %v852 = vadd.f32 %v740, %v844
        %v853 = vadd.f32 %v741, %v845
        %v854 = vadd.f32 %v742, %v846
        %s855 = sadd.s32 %s307, 10
        %s856 = sld [smem:[#allocation3 + %s855]]
        %s857 = sadd.s32 %s307, 11
        %s858 = sld [smem:[#allocation3 + %s857]]
        %s859 = sshra.s32 %s856, 3
        %s860 = sand.u32 %s856, 7
        %s861 = sshra.s32 %s856, 3
        %s862 = sand.u32 %s856, 7
        %s863 = smul.u32 %s859, 2
        %s864 = smul.u32 %s863, 8
        %s865 = sadd.s32 %s864, %s862
        %s866 = scalar_lea.vmem %s3, %s865
        %v867 = vld [vmem:[%s866] ss:$8 sm:$0x3]
        %s868 = sadd.s32 16, %s865
        %s869 = scalar_lea.vmem %s3, %s868
        %v870 = vld [vmem:[%s869] ss:$8 sm:$0x3]
        %s871 = sshra.s32 %s858, 3
        %s872 = sand.u32 %s858, 7
        %s873 = sshra.s32 %s858, 3
        %s874 = sand.u32 %s858, 7
        %s875 = smul.u32 %s871, 2
        %s876 = smul.u32 %s875, 8
        %s877 = sadd.s32 %s876, %s874
        %s878 = scalar_lea.vmem %s3, %s877
        %v879 = vld [vmem:[%s878] ss:$8 sm:$0x3]
        %s880 = sadd.s32 16, %s877
        %s881 = scalar_lea.vmem %s3, %s880
        %v882 = vld [vmem:[%s881] ss:$8 sm:$0x3]
        %s883 = scalar_lea.vmem %s4, %s865
        %v884 = vld [vmem:[%s883] ss:$8 sm:$0x3]
        %s885 = scalar_lea.vmem %s4, %s868
        %v886 = vld [vmem:[%s885] ss:$8 sm:$0x3]
        %s887 = scalar_lea.vmem %s4, %s877
        %v888 = vld [vmem:[%s887] ss:$8 sm:$0x3]
        %s889 = scalar_lea.vmem %s4, %s880
        %v890 = vld [vmem:[%s889] ss:$8 sm:$0x3]
        %v891 = vmul.f32 %v867, %v888
        %v892 = vmul.f32 %v870, %v890
        %v895 = vlaneseq
        %v896 = vshrl.u32 %v895, 7
        %v897 = vsub.s32 0, %v896
        %v898 = vrot.slane %v891, %v897
        %v899 = vlaneseq
        %v900 = vshrl.u32 %v899, 7
        %v901 = vsub.s32 1, %v900
        %v902 = vrot.slane %v891, %v901
        %v903 = vlaneseq
        %v904 = vshrl.u32 %v903, 7
        %v905 = vsub.s32 0, %v904
        %v906 = vrot.slane %v892, %v905
        %v907 = vlaneseq
        %v908 = vshrl.u32 %v907, 7
        %v909 = vsub.s32 1, %v908
        %v910 = vrot.slane %v892, %v909
        %v915 = vsub.f32 %v302, %v898
        %v916 = vsub.f32 %v303, %v902
        %v917 = vsub.f32 %v304, %v906
        %v918 = vsub.f32 %v305, %v910
        %v919 = vmul.f32 %v879, %v884
        %v920 = vmul.f32 %v882, %v886
        %v923 = vlaneseq
        %v924 = vshrl.u32 %v923, 7
        %v925 = vsub.s32 0, %v924
        %v926 = vrot.slane %v919, %v925
        %v927 = vlaneseq
        %v928 = vshrl.u32 %v927, 7
        %v929 = vsub.s32 1, %v928
        %v930 = vrot.slane %v919, %v929
        %v931 = vlaneseq
        %v932 = vshrl.u32 %v931, 7
        %v933 = vsub.s32 0, %v932
        %v934 = vrot.slane %v920, %v933
        %v935 = vlaneseq
        %v936 = vshrl.u32 %v935, 7
        %v937 = vsub.s32 1, %v936
        %v938 = vrot.slane %v920, %v937
        %v943 = vsub.f32 %v915, %v926
        %v944 = vsub.f32 %v916, %v930
        %v945 = vsub.f32 %v917, %v934
        %v946 = vsub.f32 %v918, %v938
        %v947 = vmul.f32 %v943, %v943
        %v948 = vmul.f32 %v944, %v944
        %v949 = vmul.f32 %v945, %v945
        %v950 = vmul.f32 %v946, %v946
        %v955 = vrot.slane %v947, 5
        %v956 = vrot.slane %v948, 5
        %v957 = vrot.slane %v949, 5
        %v958 = vrot.slane %v950, 5
        %v963 = vadd.f32 %v851, %v955
        %v964 = vadd.f32 %v852, %v956
        %v965 = vadd.f32 %v853, %v957
        %v966 = vadd.f32 %v854, %v958
        %s967 = sadd.s32 %s307, 12
        %s968 = sld [smem:[#allocation3 + %s967]]
        %s969 = sadd.s32 %s307, 13
        %s970 = sld [smem:[#allocation3 + %s969]]
        %s971 = sshra.s32 %s968, 3
        %s972 = sand.u32 %s968, 7
        %s973 = sshra.s32 %s968, 3
        %s974 = sand.u32 %s968, 7
        %s975 = smul.u32 %s971, 2
        %s976 = smul.u32 %s975, 8
        %s977 = sadd.s32 %s976, %s974
        %s978 = scalar_lea.vmem %s3, %s977
        %v979 = vld [vmem:[%s978] ss:$8 sm:$0x3]
        %s980 = sadd.s32 16, %s977
        %s981 = scalar_lea.vmem %s3, %s980
        %v982 = vld [vmem:[%s981] ss:$8 sm:$0x3]
        %s983 = sshra.s32 %s970, 3
        %s984 = sand.u32 %s970, 7
        %s985 = sshra.s32 %s970, 3
        %s986 = sand.u32 %s970, 7
        %s987 = smul.u32 %s983, 2
        %s988 = smul.u32 %s987, 8
        %s989 = sadd.s32 %s988, %s986
        %s990 = scalar_lea.vmem %s3, %s989
        %v991 = vld [vmem:[%s990] ss:$8 sm:$0x3]
        %s992 = sadd.s32 16, %s989
        %s993 = scalar_lea.vmem %s3, %s992
        %v994 = vld [vmem:[%s993] ss:$8 sm:$0x3]
        %s995 = scalar_lea.vmem %s4, %s977
        %v996 = vld [vmem:[%s995] ss:$8 sm:$0x3]
        %s997 = scalar_lea.vmem %s4, %s980
        %v998 = vld [vmem:[%s997] ss:$8 sm:$0x3]
        %s999 = scalar_lea.vmem %s4, %s989
        %v1000 = vld [vmem:[%s999] ss:$8 sm:$0x3]
        %s1001 = scalar_lea.vmem %s4, %s992
        %v1002 = vld [vmem:[%s1001] ss:$8 sm:$0x3]
        %v1003 = vmul.f32 %v979, %v1000
        %v1004 = vmul.f32 %v982, %v1002
        %v1007 = vlaneseq
        %v1008 = vshrl.u32 %v1007, 7
        %v1009 = vsub.s32 0, %v1008
        %v1010 = vrot.slane %v1003, %v1009
        %v1011 = vlaneseq
        %v1012 = vshrl.u32 %v1011, 7
        %v1013 = vsub.s32 1, %v1012
        %v1014 = vrot.slane %v1003, %v1013
        %v1015 = vlaneseq
        %v1016 = vshrl.u32 %v1015, 7
        %v1017 = vsub.s32 0, %v1016
        %v1018 = vrot.slane %v1004, %v1017
        %v1019 = vlaneseq
        %v1020 = vshrl.u32 %v1019, 7
        %v1021 = vsub.s32 1, %v1020
        %v1022 = vrot.slane %v1004, %v1021
        %v1027 = vsub.f32 %v302, %v1010
        %v1028 = vsub.f32 %v303, %v1014
        %v1029 = vsub.f32 %v304, %v1018
        %v1030 = vsub.f32 %v305, %v1022
        %v1031 = vmul.f32 %v991, %v996
        %v1032 = vmul.f32 %v994, %v998
        %v1035 = vlaneseq
        %v1036 = vshrl.u32 %v1035, 7
        %v1037 = vsub.s32 0, %v1036
        %v1038 = vrot.slane %v1031, %v1037
        %v1039 = vlaneseq
        %v1040 = vshrl.u32 %v1039, 7
        %v1041 = vsub.s32 1, %v1040
        %v1042 = vrot.slane %v1031, %v1041
        %v1043 = vlaneseq
        %v1044 = vshrl.u32 %v1043, 7
        %v1045 = vsub.s32 0, %v1044
        %v1046 = vrot.slane %v1032, %v1045
        %v1047 = vlaneseq
        %v1048 = vshrl.u32 %v1047, 7
        %v1049 = vsub.s32 1, %v1048
        %v1050 = vrot.slane %v1032, %v1049
        %v1055 = vsub.f32 %v1027, %v1038
        %v1056 = vsub.f32 %v1028, %v1042
        %v1057 = vsub.f32 %v1029, %v1046
        %v1058 = vsub.f32 %v1030, %v1050
        %v1059 = vmul.f32 %v1055, %v1055
        %v1060 = vmul.f32 %v1056, %v1056
        %v1061 = vmul.f32 %v1057, %v1057
        %v1062 = vmul.f32 %v1058, %v1058
        %v1067 = vrot.slane %v1059, 6
        %v1068 = vrot.slane %v1060, 6
        %v1069 = vrot.slane %v1061, 6
        %v1070 = vrot.slane %v1062, 6
        %v1075 = vadd.f32 %v963, %v1067
        %v1076 = vadd.f32 %v964, %v1068
        %v1077 = vadd.f32 %v965, %v1069
        %v1078 = vadd.f32 %v966, %v1070
        %s1079 = sadd.s32 %s307, 14
        %s1080 = sld [smem:[#allocation3 + %s1079]]
        %s1081 = sadd.s32 %s307, 15
        %s1082 = sld [smem:[#allocation3 + %s1081]]
        %s1083 = sshra.s32 %s1080, 3
        %s1084 = sand.u32 %s1080, 7
        %s1085 = sshra.s32 %s1080, 3
        %s1086 = sand.u32 %s1080, 7
        %s1087 = smul.u32 %s1083, 2
        %s1088 = smul.u32 %s1087, 8
        %s1089 = sadd.s32 %s1088, %s1086
        %s1090 = scalar_lea.vmem %s3, %s1089
        %v1091 = vld [vmem:[%s1090] ss:$8 sm:$0x3]
        %s1092 = sadd.s32 16, %s1089
        %s1093 = scalar_lea.vmem %s3, %s1092
        %v1094 = vld [vmem:[%s1093] ss:$8 sm:$0x3]
        %s1095 = sshra.s32 %s1082, 3
        %s1096 = sand.u32 %s1082, 7
        %s1097 = sshra.s32 %s1082, 3
        %s1098 = sand.u32 %s1082, 7
        %s1099 = smul.u32 %s1095, 2
        %s1100 = smul.u32 %s1099, 8
        %s1101 = sadd.s32 %s1100, %s1098
        %s1102 = scalar_lea.vmem %s3, %s1101
        %v1103 = vld [vmem:[%s1102] ss:$8 sm:$0x3]
        %s1104 = sadd.s32 16, %s1101
        %s1105 = scalar_lea.vmem %s3, %s1104
        %v1106 = vld [vmem:[%s1105] ss:$8 sm:$0x3]
        %s1107 = scalar_lea.vmem %s4, %s1089
        %v1108 = vld [vmem:[%s1107] ss:$8 sm:$0x3]
        %s1109 = scalar_lea.vmem %s4, %s1092
        %v1110 = vld [vmem:[%s1109] ss:$8 sm:$0x3]
        %s1111 = scalar_lea.vmem %s4, %s1101
        %v1112 = vld [vmem:[%s1111] ss:$8 sm:$0x3]
        %s1113 = scalar_lea.vmem %s4, %s1104
        %v1114 = vld [vmem:[%s1113] ss:$8 sm:$0x3]
        %v1115 = vmul.f32 %v1091, %v1112
        %v1116 = vmul.f32 %v1094, %v1114
        %v1119 = vlaneseq
        %v1120 = vshrl.u32 %v1119, 7
        %v1121 = vsub.s32 0, %v1120
        %v1122 = vrot.slane %v1115, %v1121
        %v1123 = vlaneseq
        %v1124 = vshrl.u32 %v1123, 7
        %v1125 = vsub.s32 1, %v1124
        %v1126 = vrot.slane %v1115, %v1125
        %v1127 = vlaneseq
        %v1128 = vshrl.u32 %v1127, 7
        %v1129 = vsub.s32 0, %v1128
        %v1130 = vrot.slane %v1116, %v1129
        %v1131 = vlaneseq
        %v1132 = vshrl.u32 %v1131, 7
        %v1133 = vsub.s32 1, %v1132
        %v1134 = vrot.slane %v1116, %v1133
        %v1139 = vsub.f32 %v302, %v1122
        %v1140 = vsub.f32 %v303, %v1126
        %v1141 = vsub.f32 %v304, %v1130
        %v1142 = vsub.f32 %v305, %v1134
        %v1143 = vmul.f32 %v1103, %v1108
        %v1144 = vmul.f32 %v1106, %v1110
        %v1147 = vlaneseq
        %v1148 = vshrl.u32 %v1147, 7
        %v1149 = vsub.s32 0, %v1148
        %v1150 = vrot.slane %v1143, %v1149
        %v1151 = vlaneseq
        %v1152 = vshrl.u32 %v1151, 7
        %v1153 = vsub.s32 1, %v1152
        %v1154 = vrot.slane %v1143, %v1153
        %v1155 = vlaneseq
        %v1156 = vshrl.u32 %v1155, 7
        %v1157 = vsub.s32 0, %v1156
        %v1158 = vrot.slane %v1144, %v1157
        %v1159 = vlaneseq
        %v1160 = vshrl.u32 %v1159, 7
        %v1161 = vsub.s32 1, %v1160
        %v1162 = vrot.slane %v1144, %v1161
        %v1167 = vsub.f32 %v1139, %v1150
        %v1168 = vsub.f32 %v1140, %v1154
        %v1169 = vsub.f32 %v1141, %v1158
        %v1170 = vsub.f32 %v1142, %v1162
        %v1171 = vmul.f32 %v1167, %v1167
        %v1172 = vmul.f32 %v1168, %v1168
        %v1173 = vmul.f32 %v1169, %v1169
        %v1174 = vmul.f32 %v1170, %v1170
        %v1179 = vrot.slane %v1171, 7
        %v1180 = vrot.slane %v1172, 7
        %v1181 = vrot.slane %v1173, 7
        %v1182 = vrot.slane %v1174, 7
        %v1187 = vadd.f32 %v1075, %v1179
        %v1188 = vadd.f32 %v1076, %v1180
        %v1189 = vadd.f32 %v1077, %v1181
        %v1190 = vadd.f32 %v1078, %v1182
        %v1191 = vld [vmem:[%s286] sm:$0xf]
        %v1196 = vcombine.low %v1187, %v1188
        %v1198 = vunpack.c.l.s4 1983009808
        %v1199 = vunpack.c.0.s8 %v1198
        %v1200 = vlaneseq
        %v1201 = vshrl.u32 %v1200, 7
        %v1202 = vsub.s32 %v1199, %v1201
        %v1203 = vrot.slane %v1196, %v1202
        %v1204 = vcombine.low %v1189, %v1190
        %v1206 = vunpack.c.l.s4 1983009808
        %v1207 = vunpack.c.0.s8 %v1206
        %v1208 = vlaneseq
        %v1209 = vshrl.u32 %v1208, 7
        %v1210 = vsub.s32 %v1207, %v1209
        %v1211 = vrot.slane %v1204, %v1210
        %vm1212 = vcmask 1044484
        %v1213 = vsel %vm1212, %v1203, %v1203
        %vm1214 = vcmask 1046534
        %v1215 = vsel %vm1214, %v1203, %v1213
        %v1216 = vrot.slane %v1211, 7
        %vm1217 = vcmask 1041409
        %v1218 = vsel %vm1217, %v1216, %v1215
        %vm1219 = vcmask 1043459
        %v1220 = vsel %vm1219, %v1216, %v1218
        %vm1221 = vcmask 1045509
        %v1222 = vsel %vm1221, %v1216, %v1220
        %vm1223 = vcmask 1047559
        %v1224 = vsel %vm1223, %v1216, %v1222
        %v1226 = vadd.f32 %v1191, %v1224
        %1227 = vst [vmem:[%s286] sm:$0xf] %v1226
        %s1228 = sand.u32 %s146, 1
        %s1229 = scalar_lea.sflag [#allocation7], %s1228
        %s1230 = sand.u32 %s146, 1
        %s1231 = smul.addr %s1230, 4
        %s1232 = scalar_lea.vmem [#allocation8], %s1231
        // Predicated region
        $region68: #{tpu_custom_call.1} parent=54 // pred_check
          %p1233 = pneg %p156
        $region69: #{tpu_custom_call.1} parent=54 // pred_check_branch
          %1235 = sbr.rel (%p1233) target = $region71
        $region70: #{tpu_custom_call.1} parent=54 // pred_region
          %s1237 = ssub.s32 64, 64
          %1238 = vsyncadd %s1229, %s1237
          %s1239 = smul.addr %s32, 2
          %s1240 = smul.addr %s1239, 32
          %s1241 = scalar_lea.hbm %s5, %s1240
          %s1243 = sshll.u32 %s1232, 4
          %s1244 = int_to_ptr.vmem [resolvable:$true] %s1243
          %1246 = dma.vmem_to_hbm [thread:$0]  %s1244, 64, %s1241, %s1229
        $region71: #{tpu_custom_call.1} parent=54 // pred_fallthru
          _
      $region55: #{tpu_custom_call.1} parent=5 // pred_fallthru
        _
      %p1247 = scmp.le.s32.totalorder 2, %s23
      // Predicated region
      $region72: #{tpu_custom_call.1} parent=5 // pred_check
        %p1248 = pneg %p1247
      $region73: #{tpu_custom_call.1} parent=5 // pred_check_branch
        %1250 = sbr.rel (%p1248) target = $region75
      $region74: #{tpu_custom_call.1} parent=5 // pred_region
        %s1251 = ssub.s32 %s23, 2
        // Predicated region
        $region76: #{tpu_custom_call.1} parent=74 // pred_check
          %p1252 = pneg %p162
        $region77: #{tpu_custom_call.1} parent=74 // pred_check_branch
          %1254 = sbr.rel (%p1252) target = $region79
        $region78: #{tpu_custom_call.1} parent=74 // pred_region
          %s1255 = sand.u32 %s147, 1
          %s1256 = scalar_lea.sflag [#allocation7], %s1255
          %s1257 = sand.u32 %s147, 1
          %s1258 = smul.addr %s1257, 4
          %s1259 = scalar_lea.vmem [#allocation8], %s1258
          %1260 = dma.done %s1256, 64
        $region79: #{tpu_custom_call.1} parent=74 // pred_fallthru
          _
      $region75: #{tpu_custom_call.1} parent=5 // pred_fallthru
        _
    $region6: #{tpu_custom_call.1} parent=1 // loop_footer
      %s27 = sadd.s32 1, %s23
    $region7: #{tpu_custom_call.1} parent=1 // loop_footer_branch
      %22 = sbr.rel target = $region3
    $region8: #{tpu_custom_call.1} parent=1 // loop_exit
      _
    %1261 = vsyncpa [#allocation6], 1
    %s1262 = scalar_lea.sflag [#allocation6], 1
    %1263 = vsyncpa %s1262, 1
    %1264 = vsyncpa [#allocation7], 1
    %s1265 = scalar_lea.sflag [#allocation7], 1
    %1266 = vsyncpa %s1265, 1

</llo_original>
